<compile_context>
chip_gen: v7x
topology: tpu7x:2x2x1
jax: 0.10.0
libtpu: 0.0.40
codegen_flags: <defaults>
</compile_context>

<pallas_src>
import jax
import jax.numpy as jnp
from jax import lax
from jax.experimental import pallas as pl
from jax.experimental.pallas import tpu as pltpu


def _fused_kernel(taps_ref, w1_ref, b1_ref, w2_ref, b2_ref, o_ref):
    # taps_ref: (4*Q, 144)  rows = [quad a*2+b][i*Wp+j (padded to Q)], Q multiple of 8
    # w1_ref:   (144, 32)   b1_ref: (1, 32)   (conv1 bias with the -0.1 already folded in)
    # w2_ref:   (32, 32)    b2_ref: (1, 32)
    # o_ref:    (Q, 32)
    Q = o_ref.shape[0]

    # conv1 over all four pool-quadrants as ONE weight-stationary MXU matmul.
    y = jnp.dot(taps_ref[...], w1_ref[...], preferred_element_type=jnp.float32)
    v2 = jnp.maximum(y + b1_ref[...], 0.0)                       # relu(conv1 - 0.1)

    # 2x2 max-pool: elementwise max of the four sublane-aligned quad row-blocks.
    v3 = jnp.maximum(jnp.maximum(v2[0:Q], v2[Q:2 * Q]),
                     jnp.maximum(v2[2 * Q:3 * Q], v2[3 * Q:4 * Q]))   # (Q, 32)

    v5 = jnp.maximum(v3 - 0.5, 0.0)
    v6 = jnp.dot(v5, w2_ref[...], preferred_element_type=jnp.float32) + b2_ref[...]
    o_ref[...] = jax.nn.sigmoid(jnp.tanh(v6) - 0.5).astype(o_ref.dtype)


@jax.jit
def model_forward(x_nchw, w1_oihw, b1, w2_oihw, b2):
    N, Cin, H, W = x_nchw.shape
    Cout1, _, K, _ = w1_oihw.shape
    Cout2 = w2_oihw.shape[0]
    assert N == 1 and K == 3 and H % 2 == 0 and W % 2 == 0
    Hp, Wp = H // 2, W // 2
    Kdim = K * K * Cin
    Q = ((Hp * Wp + 7) // 8) * 8                                  # per-quad rows, 8-aligned

    # ---- layout glue (XLA, fused under this jit) ----
    x_hwc = jnp.transpose(x_nchw[0], (1, 2, 0)).astype(jnp.float32)   # (H, W, Cin)
    xpad = jnp.pad(x_hwc, ((1, 1), (1, 1), (0, 0)))                   # (H+2, W+2, Cin)

    # im2col, built directly in the kernel's final (4*Q, Kdim) layout (one shot, no
    # intermediate full tap tensor).  quad (a, b) <-> pool tap at conv-output (2i+a, 2j+b).
    quads = []
    for a in range(2):
        for b in range(2):
            taps_q = jnp.concatenate(
                [xpad[a + kh: a + kh + 2 * Hp - 1: 2,
                      b + kw: b + kw + 2 * Wp - 1: 2, :]
                 for kh in range(K) for kw in range(K)],
                axis=-1).reshape(Hp * Wp, Kdim)                   # (Hp*Wp, 144)
            quads.append(jnp.pad(taps_q, ((0, Q - Hp * Wp), (0, 0))))
    taps = jnp.concatenate(quads, axis=0)                         # (4*Q, 144)

    # weights as plain 2D matmul operands (kept stationary on the MXU in-kernel)
    w1m = jnp.transpose(w1_oihw, (2, 3, 1, 0)).reshape(Kdim, Cout1).astype(jnp.float32)
    b1r = (b1.astype(jnp.float32) - 0.1).reshape(1, Cout1)        # fold -0.1 (exact in f32)
    w2m = jnp.transpose(w2_oihw[:, :, 0, 0], (1, 0)).astype(jnp.float32)   # (Cout1, Cout2)
    b2r = b2.astype(jnp.float32).reshape(1, Cout2)

    flops = 2 * (4 * Q) * Kdim * Cout1 + 2 * Q * Cout1 * Cout2
    bytes_accessed = 4 * ((4 * Q) * Kdim + Kdim * Cout1 + Cout1 * Cout2
                          + 2 * Cout1 + Q * Cout2)
    transcendentals = 2 * Q * Cout2

    out_flat = pl.pallas_call(
        _fused_kernel,
        out_shape=jax.ShapeDtypeStruct((Q, Cout2), jnp.float32),
        grid_spec=pltpu.PrefetchScalarGridSpec(
            num_scalar_prefetch=0,
            grid=(1,),                                            # single step; all VMEM-resident
            in_specs=[
                pl.BlockSpec(taps.shape, lambda i: (0, 0)),
                pl.BlockSpec(w1m.shape, lambda i: (0, 0)),
                pl.BlockSpec(b1r.shape, lambda i: (0, 0)),
                pl.BlockSpec(w2m.shape, lambda i: (0, 0)),
                pl.BlockSpec(b2r.shape, lambda i: (0, 0)),
            ],
            out_specs=pl.BlockSpec((Q, Cout2), lambda i: (0, 0)),
        ),
        compiler_params=pltpu.CompilerParams(dimension_semantics=("arbitrary",)),
        cost_estimate=pl.CostEstimate(flops=flops,
                                      transcendentals=transcendentals,
                                      bytes_accessed=bytes_accessed),
    )(taps, w1m, b1r, w2m, b2r)

    # rows [i*Wp+j] -> NCHW
    out_hwc = out_flat[:Hp * Wp].reshape(Hp, Wp, Cout2)
    return jnp.transpose(out_hwc, (2, 0, 1))[None]


def reference_forward(x, w1, b1, w2, b2):
    dn1 = lax.conv_dimension_numbers(x.shape, w1.shape, ("NCHW", "OIHW", "NCHW"))
    v1 = lax.conv_general_dilated(x, w1, (1, 1), ((1, 1), (1, 1)), dimension_numbers=dn1)
    v1 = v1 + b1[None, :, None, None]
    v2 = jnp.maximum(v1 - 0.1, 0.0)
    v3 = lax.reduce_window(v2, -jnp.inf, lax.max, (1, 1, 2, 2), (1, 1, 2, 2), "VALID")
    v5 = jnp.maximum(v3 - 0.5, 0.0)
    dn2 = lax.conv_dimension_numbers(v5.shape, w2.shape, ("NCHW", "OIHW", "NCHW"))
    v6 = lax.conv_general_dilated(v5, w2, (1, 1), "VALID", dimension_numbers=dn2)
    v6 = v6 + b2[None, :, None, None]
    return jax.nn.sigmoid(jnp.tanh(v6) - 0.5)


if __name__ == "__main__":
    key = jax.random.PRNGKey(0)
    k_x, k_w1, k_b1, k_w2, k_b2 = jax.random.split(key, 5)

    # shapes per the PyTorch module: x1 = torch.randn(1, 16, 28, 28)
    x = jax.random.normal(k_x, (1, 16, 28, 28), jnp.float32)
    w1 = jax.random.normal(k_w1, (32, 16, 3, 3), jnp.float32) * 0.1   # conv1 weight (OIHW)
    b1 = jax.random.normal(k_b1, (32,), jnp.float32) * 0.1            # conv1 bias
    w2 = jax.random.normal(k_w2, (32, 32, 1, 1), jnp.float32) * 0.1   # conv2 weight (see TODO)
    b2 = jax.random.normal(k_b2, (32,), jnp.float32) * 0.1            # conv2 bias

    out = jax.block_until_ready(model_forward(x, w1, b1, w2, b2))
    ref = jax.block_until_ready(reference_forward(x, w1, b1, w2, b2))

    assert out.shape == (1, 32, 14, 14), out.shape
    max_err = float(jnp.max(jnp.abs(out - ref)))
    assert max_err < 1e-4, f"mismatch vs reference, max abs err = {max_err}"

    print("KERNEL_OK")
</pallas_src>

<mosaic_0001>
module attributes {stable_mosaic.version = 11 : i64} {
  func.func @_fused_kernel(%arg0: i32, %arg1: memref<800x144xf32, #tpu.memory_space<vmem>>, %arg2: memref<144x32xf32, #tpu.memory_space<vmem>>, %arg3: memref<1x32xf32, #tpu.memory_space<vmem>>, %arg4: memref<32x32xf32, #tpu.memory_space<vmem>>, %arg5: memref<1x32xf32, #tpu.memory_space<vmem>>, %arg6: memref<200x32xf32, #tpu.memory_space<vmem>>) attributes {dimension_semantics = [#tpu.dimension_semantics<arbitrary>], iteration_bounds = array<i64: 1>, scalar_prefetch = 0 : i64, scratch_operands = 0 : i64, tpu.core_type = #tpu.core_type<tc>, window_params = [{pipeline_mode = #tpu.pipeline_mode<synchronous>, transform_indices = @transform_0, window_bounds = array<i64: 800, 144>}, {pipeline_mode = #tpu.pipeline_mode<synchronous>, transform_indices = @transform_1, window_bounds = array<i64: 144, 32>}, {pipeline_mode = #tpu.pipeline_mode<synchronous>, transform_indices = @transform_2, window_bounds = array<i64: 1, 32>}, {pipeline_mode = #tpu.pipeline_mode<synchronous>, transform_indices = @transform_3, window_bounds = array<i64: 32, 32>}, {pipeline_mode = #tpu.pipeline_mode<synchronous>, transform_indices = @transform_4, window_bounds = array<i64: 1, 32>}, {pipeline_mode = #tpu.pipeline_mode<synchronous>, transform_indices = @transform_5, window_bounds = array<i64: 200, 32>}]} {
    %c0 = arith.constant 0 : index
    %c0_0 = arith.constant 0 : index
    %0 = vector.load %arg1[%c0, %c0_0] : memref<800x144xf32, #tpu.memory_space<vmem>>, vector<800x144xf32>
    %c0_1 = arith.constant 0 : index
    %c0_2 = arith.constant 0 : index
    %1 = vector.load %arg2[%c0_1, %c0_2] : memref<144x32xf32, #tpu.memory_space<vmem>>, vector<144x32xf32>
    %cst = arith.constant dense<0.000000e+00> : vector<800x32xf32>
    %2 = tpu.matmul %0, %1, %cst {dimension_numbers = #tpu.dot_dimension_numbers<[1], [0], [0], [1], [0, 0, 1, 1], [], []>} : vector<800x144xf32>, vector<144x32xf32>, vector<800x32xf32> -> vector<800x32xf32>
    %c0_3 = arith.constant 0 : index
    %c0_4 = arith.constant 0 : index
    %3 = vector.load %arg3[%c0_3, %c0_4] : memref<1x32xf32, #tpu.memory_space<vmem>>, vector<1x32xf32>
    %4 = vector.broadcast %3 : vector<1x32xf32> to vector<800x32xf32>
    %5 = arith.addf %2, %4 : vector<800x32xf32>
    %cst_5 = arith.constant 0.000000e+00 : f32
    %6 = vector.broadcast %cst_5 : f32 to vector<800x32xf32>
    %7 = arith.maximumf %5, %6 : vector<800x32xf32>
    %8 = vector.extract_strided_slice %7 {offsets = [0, 0], sizes = [200, 32], strides = [1, 1]} : vector<800x32xf32> to vector<200x32xf32>
    %9 = vector.extract_strided_slice %7 {offsets = [200, 0], sizes = [200, 32], strides = [1, 1]} : vector<800x32xf32> to vector<200x32xf32>
    %10 = arith.maximumf %8, %9 : vector<200x32xf32>
    %11 = vector.extract_strided_slice %7 {offsets = [400, 0], sizes = [200, 32], strides = [1, 1]} : vector<800x32xf32> to vector<200x32xf32>
    %12 = vector.extract_strided_slice %7 {offsets = [600, 0], sizes = [200, 32], strides = [1, 1]} : vector<800x32xf32> to vector<200x32xf32>
    %13 = arith.maximumf %11, %12 : vector<200x32xf32>
    %14 = arith.maximumf %10, %13 : vector<200x32xf32>
    %cst_6 = arith.constant 5.000000e-01 : f32
    %15 = vector.broadcast %cst_6 : f32 to vector<200x32xf32>
    %16 = arith.subf %14, %15 : vector<200x32xf32>
    %cst_7 = arith.constant 0.000000e+00 : f32
    %17 = vector.broadcast %cst_7 : f32 to vector<200x32xf32>
    %18 = arith.maximumf %16, %17 : vector<200x32xf32>
    %c0_8 = arith.constant 0 : index
    %c0_9 = arith.constant 0 : index
    %19 = vector.load %arg4[%c0_8, %c0_9] : memref<32x32xf32, #tpu.memory_space<vmem>>, vector<32x32xf32>
    %cst_10 = arith.constant dense<0.000000e+00> : vector<200x32xf32>
    %20 = tpu.matmul %18, %19, %cst_10 {dimension_numbers = #tpu.dot_dimension_numbers<[1], [0], [0], [1], [0, 0, 1, 1], [], []>} : vector<200x32xf32>, vector<32x32xf32>, vector<200x32xf32> -> vector<200x32xf32>
    %c0_11 = arith.constant 0 : index
    %c0_12 = arith.constant 0 : index
    %21 = vector.load %arg5[%c0_11, %c0_12] : memref<1x32xf32, #tpu.memory_space<vmem>>, vector<1x32xf32>
    %22 = vector.broadcast %21 : vector<1x32xf32> to vector<200x32xf32>
    %23 = arith.addf %20, %22 : vector<200x32xf32>
    %24 = math.tanh %23 : vector<200x32xf32>
    %cst_13 = arith.constant 5.000000e-01 : f32
    %25 = vector.broadcast %cst_13 : f32 to vector<200x32xf32>
    %26 = arith.subf %24, %25 : vector<200x32xf32>
    %27 = arith.negf %26 : vector<200x32xf32>
    %28 = math.exp %27 : vector<200x32xf32>
    %cst_14 = arith.constant 1.000000e+00 : f32
    %29 = vector.broadcast %cst_14 : f32 to vector<200x32xf32>
    %30 = arith.addf %29, %28 : vector<200x32xf32>
    %31 = arith.divf %29, %30 : vector<200x32xf32>
    %c0_15 = arith.constant 0 : index
    %c0_16 = arith.constant 0 : index
    %32 = vector.load %arg6[%c0_15, %c0_16] : memref<200x32xf32, #tpu.memory_space<vmem>>, vector<200x32xf32>
    tpu.vector_store %arg6[%c0_15, %c0_16], %31 {strides = array<i32>} : memref<200x32xf32, #tpu.memory_space<vmem>>, vector<200x32xf32>,
    return
  }
  func.func @transform_0(%arg0: i32) -> (i32, i32) {
    %c0_i32 = arith.constant 0 : i32
    %c0_i32_0 = arith.constant 0 : i32
    %c0_i32_1 = arith.constant 0 : i32
    return %c0_i32, %c0_i32_0 : i32, i32
  }
  func.func @transform_1(%arg0: i32) -> (i32, i32) {
    %c0_i32 = arith.constant 0 : i32
    %c0_i32_0 = arith.constant 0 : i32
    %c0_i32_1 = arith.constant 0 : i32
    return %c0_i32, %c0_i32_0 : i32, i32
  }
  func.func @transform_2(%arg0: i32) -> (i32, i32) {
    %c0_i32 = arith.constant 0 : i32
    %c0_i32_0 = arith.constant 0 : i32
    %c0_i32_1 = arith.constant 0 : i32
    return %c0_i32, %c0_i32_0 : i32, i32
  }
  func.func @transform_3(%arg0: i32) -> (i32, i32) {
    %c0_i32 = arith.constant 0 : i32
    %c0_i32_0 = arith.constant 0 : i32
    %c0_i32_1 = arith.constant 0 : i32
    return %c0_i32, %c0_i32_0 : i32, i32
  }
  func.func @transform_4(%arg0: i32) -> (i32, i32) {
    %c0_i32 = arith.constant 0 : i32
    %c0_i32_0 = arith.constant 0 : i32
    %c0_i32_1 = arith.constant 0 : i32
    return %c0_i32, %c0_i32_0 : i32, i32
  }
  func.func @transform_5(%arg0: i32) -> (i32, i32) {
    %c0_i32 = arith.constant 0 : i32
    %c0_i32_0 = arith.constant 0 : i32
    %c0_i32_1 = arith.constant 0 : i32
    return %c0_i32, %c0_i32_0 : i32, i32
  }
}

</mosaic_0001>

<llo_original>
// kernel: model_forward.1
$region0: #{model_forward.1}
  #allocation0 [shape = 'u32[]', space=smem, size = 0x4, offset = 0x4, fixed_abs, tag = 'smem constant byte address 0x4 - core index']
  #allocation1 [shape = 'u32[144,128]{1,0:T(1,128)}', space=vmem, size = 0x12000, scoped, tag = 'internal scratch']
  %s0 = inlined_call_operand.vmem [shape: f32[800,144], index: 0, kind: input, shape index: {}]
  %s1 = inlined_call_operand.vmem [shape: f32[144,32], index: 1, kind: input, shape index: {}]
  %s2 = inlined_call_operand.vmem [shape: f32[1,32], index: 2, kind: input, shape index: {}]
  %s3 = inlined_call_operand.vmem [shape: f32[32,32], index: 3, kind: input, shape index: {}]
  %s4 = inlined_call_operand.vmem [shape: f32[1,32], index: 4, kind: input, shape index: {}]
  %s5 = inlined_call_operand.vmem [shape: f32[200,32], index: 5, kind: output, shape index: {}]
  %s6 = sld [smem:[#allocation0]]
  $region30: #{model_forward.1} parent=0
    _
  %s8 = ssub.s32 1, %s6
  %s9 = scalar_select 0, %s8, %s6
  // Predicated region
  $region2: #{model_forward.1} parent=0 // pred_check
    _
  $region3: #{model_forward.1} parent=0 // pred_check_branch
    %11 = sbr.rel (0) target = $region5
  $region4: #{model_forward.1} parent=0 // pred_region
    _
  $region5: #{model_forward.1} parent=0 // pred_fallthru
    _
  // Predicated region
  $region6: #{model_forward.1} parent=0 // pred_check
    _
  $region7: #{model_forward.1} parent=0 // pred_check_branch
    %13 = sbr.rel (0) target = $region9
  $region8: #{model_forward.1} parent=0 // pred_region
    _
  $region9: #{model_forward.1} parent=0 // pred_fallthru
    _
  // Predicated region
  $region10: #{model_forward.1} parent=0 // pred_check
    _
  $region11: #{model_forward.1} parent=0 // pred_check_branch
    %15 = sbr.rel (0) target = $region13
  $region12: #{model_forward.1} parent=0 // pred_region
    _
  $region13: #{model_forward.1} parent=0 // pred_fallthru
    _
  // Predicated region
  $region14: #{model_forward.1} parent=0 // pred_check
    _
  $region15: #{model_forward.1} parent=0 // pred_check_branch
    %17 = sbr.rel (0) target = $region17
  $region16: #{model_forward.1} parent=0 // pred_region
    _
  $region17: #{model_forward.1} parent=0 // pred_fallthru
    _
  // Predicated region
  $region18: #{model_forward.1} parent=0 // pred_check
    _
  $region19: #{model_forward.1} parent=0 // pred_check_branch
    %19 = sbr.rel (0) target = $region21
  $region20: #{model_forward.1} parent=0 // pred_region
    _
  $region21: #{model_forward.1} parent=0 // pred_fallthru
    _
  %v20 = vld [vmem:[%s0] sm:$0xff]
  %v21 = vld [vmem:[%s0 + $0x8] sm:$0xff]
  %v22 = vld [vmem:[%s0 + $0x10] sm:$0xff]
  %v23 = vld [vmem:[%s0 + $0x18] sm:$0xff]
  %v24 = vld [vmem:[%s0 + $0x20] sm:$0xff]
  %v25 = vld [vmem:[%s0 + $0x28] sm:$0xff]
  %v26 = vld [vmem:[%s0 + $0x30] sm:$0xff]
  %v27 = vld [vmem:[%s0 + $0x38] sm:$0xff]
  %v28 = vld [vmem:[%s0 + $0x40] sm:$0xff]
  %v29 = vld [vmem:[%s0 + $0x48] sm:$0xff]
  %v30 = vld [vmem:[%s0 + $0x50] sm:$0xff]
  %v31 = vld [vmem:[%s0 + $0x58] sm:$0xff]
  %v32 = vld [vmem:[%s0 + $0x60] sm:$0xff]
  %v33 = vld [vmem:[%s0 + $0x68] sm:$0xff]
  %v34 = vld [vmem:[%s0 + $0x70] sm:$0xff]
  %v35 = vld [vmem:[%s0 + $0x78] sm:$0xff]
  %v36 = vld [vmem:[%s0 + $0x80] sm:$0xff]
  %v37 = vld [vmem:[%s0 + $0x88] sm:$0xff]
  %v38 = vld [vmem:[%s0 + $0x90] sm:$0xff]
  %v39 = vld [vmem:[%s0 + $0x98] sm:$0xff]
  %v40 = vld [vmem:[%s0 + $0xa0] sm:$0xff]
  %v41 = vld [vmem:[%s0 + $0xa8] sm:$0xff]
  %v42 = vld [vmem:[%s0 + $0xb0] sm:$0xff]
  %v43 = vld [vmem:[%s0 + $0xb8] sm:$0xff]
  %v44 = vld [vmem:[%s0 + $0xc0] sm:$0xff]
  %v45 = vld [vmem:[%s0 + $0xc8] sm:$0xff]
  %v46 = vld [vmem:[%s0 + $0xd0] sm:$0xff]
  %v47 = vld [vmem:[%s0 + $0xd8] sm:$0xff]
  %v48 = vld [vmem:[%s0 + $0xe0] sm:$0xff]
  %v49 = vld [vmem:[%s0 + $0xe8] sm:$0xff]
  %v50 = vld [vmem:[%s0 + $0xf0] sm:$0xff]
  %v51 = vld [vmem:[%s0 + $0xf8] sm:$0xff]
  %v52 = vld [vmem:[%s0 + $0x100] sm:$0xff]
  %v53 = vld [vmem:[%s0 + $0x108] sm:$0xff]
  %v54 = vld [vmem:[%s0 + $0x110] sm:$0xff]
  %v55 = vld [vmem:[%s0 + $0x118] sm:$0xff]
  %v56 = vld [vmem:[%s0 + $0x120] sm:$0xff]
  %v57 = vld [vmem:[%s0 + $0x128] sm:$0xff]
  %v58 = vld [vmem:[%s0 + $0x130] sm:$0xff]
  %v59 = vld [vmem:[%s0 + $0x138] sm:$0xff]
  %v60 = vld [vmem:[%s0 + $0x140] sm:$0xff]
  %v61 = vld [vmem:[%s0 + $0x148] sm:$0xff]
  %v62 = vld [vmem:[%s0 + $0x150] sm:$0xff]
  %v63 = vld [vmem:[%s0 + $0x158] sm:$0xff]
  %v64 = vld [vmem:[%s0 + $0x160] sm:$0xff]
  %v65 = vld [vmem:[%s0 + $0x168] sm:$0xff]
  %v66 = vld [vmem:[%s0 + $0x170] sm:$0xff]
  %v67 = vld [vmem:[%s0 + $0x178] sm:$0xff]
  %v68 = vld [vmem:[%s0 + $0x180] sm:$0xff]
  %v69 = vld [vmem:[%s0 + $0x188] sm:$0xff]
  %v70 = vld [vmem:[%s0 + $0x190] sm:$0xff]
  %v71 = vld [vmem:[%s0 + $0x198] sm:$0xff]
  %v72 = vld [vmem:[%s0 + $0x1a0] sm:$0xff]
  %v73 = vld [vmem:[%s0 + $0x1a8] sm:$0xff]
  %v74 = vld [vmem:[%s0 + $0x1b0] sm:$0xff]
  %v75 = vld [vmem:[%s0 + $0x1b8] sm:$0xff]
  %v76 = vld [vmem:[%s0 + $0x1c0] sm:$0xff]
  %v77 = vld [vmem:[%s0 + $0x1c8] sm:$0xff]
  %v78 = vld [vmem:[%s0 + $0x1d0] sm:$0xff]
  %v79 = vld [vmem:[%s0 + $0x1d8] sm:$0xff]
  %v80 = vld [vmem:[%s0 + $0x1e0] sm:$0xff]
  %v81 = vld [vmem:[%s0 + $0x1e8] sm:$0xff]
  %v82 = vld [vmem:[%s0 + $0x1f0] sm:$0xff]
  %v83 = vld [vmem:[%s0 + $0x1f8] sm:$0xff]
  %v84 = vld [vmem:[%s0 + $0x200] sm:$0xff]
  %v85 = vld [vmem:[%s0 + $0x208] sm:$0xff]
  %v86 = vld [vmem:[%s0 + $0x210] sm:$0xff]
  %v87 = vld [vmem:[%s0 + $0x218] sm:$0xff]
  %v88 = vld [vmem:[%s0 + $0x220] sm:$0xff]
  %v89 = vld [vmem:[%s0 + $0x228] sm:$0xff]
  %v90 = vld [vmem:[%s0 + $0x230] sm:$0xff]
  %v91 = vld [vmem:[%s0 + $0x238] sm:$0xff]
  %v92 = vld [vmem:[%s0 + $0x240] sm:$0xff]
  %v93 = vld [vmem:[%s0 + $0x248] sm:$0xff]
  %v94 = vld [vmem:[%s0 + $0x250] sm:$0xff]
  %v95 = vld [vmem:[%s0 + $0x258] sm:$0xff]
  %v96 = vld [vmem:[%s0 + $0x260] sm:$0xff]
  %v97 = vld [vmem:[%s0 + $0x268] sm:$0xff]
  %v98 = vld [vmem:[%s0 + $0x270] sm:$0xff]
  %v99 = vld [vmem:[%s0 + $0x278] sm:$0xff]
  %v100 = vld [vmem:[%s0 + $0x280] sm:$0xff]
  %v101 = vld [vmem:[%s0 + $0x288] sm:$0xff]
  %v102 = vld [vmem:[%s0 + $0x290] sm:$0xff]
  %v103 = vld [vmem:[%s0 + $0x298] sm:$0xff]
  %v104 = vld [vmem:[%s0 + $0x2a0] sm:$0xff]
  %v105 = vld [vmem:[%s0 + $0x2a8] sm:$0xff]
  %v106 = vld [vmem:[%s0 + $0x2b0] sm:$0xff]
  %v107 = vld [vmem:[%s0 + $0x2b8] sm:$0xff]
  %v108 = vld [vmem:[%s0 + $0x2c0] sm:$0xff]
  %v109 = vld [vmem:[%s0 + $0x2c8] sm:$0xff]
  %v110 = vld [vmem:[%s0 + $0x2d0] sm:$0xff]
  %v111 = vld [vmem:[%s0 + $0x2d8] sm:$0xff]
  %v112 = vld [vmem:[%s0 + $0x2e0] sm:$0xff]
  %v113 = vld [vmem:[%s0 + $0x2e8] sm:$0xff]
  %v114 = vld [vmem:[%s0 + $0x2f0] sm:$0xff]
  %v115 = vld [vmem:[%s0 + $0x2f8] sm:$0xff]
  %v116 = vld [vmem:[%s0 + $0x300] sm:$0xff]
  %v117 = vld [vmem:[%s0 + $0x308] sm:$0xff]
  %v118 = vld [vmem:[%s0 + $0x310] sm:$0xff]
  %v119 = vld [vmem:[%s0 + $0x318] sm:$0xff]
  %v120 = vld [vmem:[%s0 + $0x320] sm:$0xff]
  %v121 = vld [vmem:[%s0 + $0x328] sm:$0xff]
  %v122 = vld [vmem:[%s0 + $0x330] sm:$0xff]
  %v123 = vld [vmem:[%s0 + $0x338] sm:$0xff]
  %v124 = vld [vmem:[%s0 + $0x340] sm:$0xff]
  %v125 = vld [vmem:[%s0 + $0x348] sm:$0xff]
  %v126 = vld [vmem:[%s0 + $0x350] sm:$0xff]
  %v127 = vld [vmem:[%s0 + $0x358] sm:$0xff]
  %v128 = vld [vmem:[%s0 + $0x360] sm:$0xff]
  %v129 = vld [vmem:[%s0 + $0x368] sm:$0xff]
  %v130 = vld [vmem:[%s0 + $0x370] sm:$0xff]
  %v131 = vld [vmem:[%s0 + $0x378] sm:$0xff]
  %v132 = vld [vmem:[%s0 + $0x380] sm:$0xff]
  %v133 = vld [vmem:[%s0 + $0x388] sm:$0xff]
  %v134 = vld [vmem:[%s0 + $0x390] sm:$0xff]
  %v135 = vld [vmem:[%s0 + $0x398] sm:$0xff]
  %v136 = vld [vmem:[%s0 + $0x3a0] sm:$0xff]
  %v137 = vld [vmem:[%s0 + $0x3a8] sm:$0xff]
  %v138 = vld [vmem:[%s0 + $0x3b0] sm:$0xff]
  %v139 = vld [vmem:[%s0 + $0x3b8] sm:$0xff]
  %v140 = vld [vmem:[%s0 + $0x3c0] sm:$0xff]
  %v141 = vld [vmem:[%s0 + $0x3c8] sm:$0xff]
  %v142 = vld [vmem:[%s0 + $0x3d0] sm:$0xff]
  %v143 = vld [vmem:[%s0 + $0x3d8] sm:$0xff]
  %v144 = vld [vmem:[%s0 + $0x3e0] sm:$0xff]
  %v145 = vld [vmem:[%s0 + $0x3e8] sm:$0xff]
  %v146 = vld [vmem:[%s0 + $0x3f0] sm:$0xff]
  %v147 = vld [vmem:[%s0 + $0x3f8] sm:$0xff]
  %v148 = vld [vmem:[%s0 + $0x400] sm:$0xff]
  %v149 = vld [vmem:[%s0 + $0x408] sm:$0xff]
  %v150 = vld [vmem:[%s0 + $0x410] sm:$0xff]
  %v151 = vld [vmem:[%s0 + $0x418] sm:$0xff]
  %v152 = vld [vmem:[%s0 + $0x420] sm:$0xff]
  %v153 = vld [vmem:[%s0 + $0x428] sm:$0xff]
  %v154 = vld [vmem:[%s0 + $0x430] sm:$0xff]
  %v155 = vld [vmem:[%s0 + $0x438] sm:$0xff]
  %v156 = vld [vmem:[%s0 + $0x440] sm:$0xff]
  %v157 = vld [vmem:[%s0 + $0x448] sm:$0xff]
  %v158 = vld [vmem:[%s0 + $0x450] sm:$0xff]
  %v159 = vld [vmem:[%s0 + $0x458] sm:$0xff]
  %v160 = vld [vmem:[%s0 + $0x460] sm:$0xff]
  %v161 = vld [vmem:[%s0 + $0x468] sm:$0xff]
  %v162 = vld [vmem:[%s0 + $0x470] sm:$0xff]
  %v163 = vld [vmem:[%s0 + $0x478] sm:$0xff]
  %v164 = vld [vmem:[%s0 + $0x480] sm:$0xff]
  %v165 = vld [vmem:[%s0 + $0x488] sm:$0xff]
  %v166 = vld [vmem:[%s0 + $0x490] sm:$0xff]
  %v167 = vld [vmem:[%s0 + $0x498] sm:$0xff]
  %v168 = vld [vmem:[%s0 + $0x4a0] sm:$0xff]
  %v169 = vld [vmem:[%s0 + $0x4a8] sm:$0xff]
  %v170 = vld [vmem:[%s0 + $0x4b0] sm:$0xff]
  %v171 = vld [vmem:[%s0 + $0x4b8] sm:$0xff]
  %v172 = vld [vmem:[%s0 + $0x4c0] sm:$0xff]
  %v173 = vld [vmem:[%s0 + $0x4c8] sm:$0xff]
  %v174 = vld [vmem:[%s0 + $0x4d0] sm:$0xff]
  %v175 = vld [vmem:[%s0 + $0x4d8] sm:$0xff]
  %v176 = vld [vmem:[%s0 + $0x4e0] sm:$0xff]
  %v177 = vld [vmem:[%s0 + $0x4e8] sm:$0xff]
  %v178 = vld [vmem:[%s0 + $0x4f0] sm:$0xff]
  %v179 = vld [vmem:[%s0 + $0x4f8] sm:$0xff]
  %v180 = vld [vmem:[%s0 + $0x500] sm:$0xff]
  %v181 = vld [vmem:[%s0 + $0x508] sm:$0xff]
  %v182 = vld [vmem:[%s0 + $0x510] sm:$0xff]
  %v183 = vld [vmem:[%s0 + $0x518] sm:$0xff]
  %v184 = vld [vmem:[%s0 + $0x520] sm:$0xff]
  %v185 = vld [vmem:[%s0 + $0x528] sm:$0xff]
  %v186 = vld [vmem:[%s0 + $0x530] sm:$0xff]
  %v187 = vld [vmem:[%s0 + $0x538] sm:$0xff]
  %v188 = vld [vmem:[%s0 + $0x540] sm:$0xff]
  %v189 = vld [vmem:[%s0 + $0x548] sm:$0xff]
  %v190 = vld [vmem:[%s0 + $0x550] sm:$0xff]
  %v191 = vld [vmem:[%s0 + $0x558] sm:$0xff]
  %v192 = vld [vmem:[%s0 + $0x560] sm:$0xff]
  %v193 = vld [vmem:[%s0 + $0x568] sm:$0xff]
  %v194 = vld [vmem:[%s0 + $0x570] sm:$0xff]
  %v195 = vld [vmem:[%s0 + $0x578] sm:$0xff]
  %v196 = vld [vmem:[%s0 + $0x580] sm:$0xff]
  %v197 = vld [vmem:[%s0 + $0x588] sm:$0xff]
  %v198 = vld [vmem:[%s0 + $0x590] sm:$0xff]
  %v199 = vld [vmem:[%s0 + $0x598] sm:$0xff]
  %v200 = vld [vmem:[%s0 + $0x5a0] sm:$0xff]
  %v201 = vld [vmem:[%s0 + $0x5a8] sm:$0xff]
  %v202 = vld [vmem:[%s0 + $0x5b0] sm:$0xff]
  %v203 = vld [vmem:[%s0 + $0x5b8] sm:$0xff]
  %v204 = vld [vmem:[%s0 + $0x5c0] sm:$0xff]
  %v205 = vld [vmem:[%s0 + $0x5c8] sm:$0xff]
  %v206 = vld [vmem:[%s0 + $0x5d0] sm:$0xff]
  %v207 = vld [vmem:[%s0 + $0x5d8] sm:$0xff]
  %v208 = vld [vmem:[%s0 + $0x5e0] sm:$0xff]
  %v209 = vld [vmem:[%s0 + $0x5e8] sm:$0xff]
  %v210 = vld [vmem:[%s0 + $0x5f0] sm:$0xff]
  %v211 = vld [vmem:[%s0 + $0x5f8] sm:$0xff]
  %v212 = vld [vmem:[%s0 + $0x600] sm:$0xff]
  %v213 = vld [vmem:[%s0 + $0x608] sm:$0xff]
  %v214 = vld [vmem:[%s0 + $0x610] sm:$0xff]
  %v215 = vld [vmem:[%s0 + $0x618] sm:$0xff]
  %v216 = vld [vmem:[%s0 + $0x620] sm:$0xff]
  %v217 = vld [vmem:[%s0 + $0x628] sm:$0xff]
  %v218 = vld [vmem:[%s0 + $0x630] sm:$0xff]
  %v219 = vld [vmem:[%s0 + $0x638] sm:$0xff]
  %v220 = vld [vmem:[%s1] sm:$0xff]
  %v221 = vld [vmem:[%s1 + $0x8] sm:$0xff]
  %v222 = vld [vmem:[%s1 + $0x10] sm:$0xff]
  %v223 = vld [vmem:[%s1 + $0x18] sm:$0xff]
  %v224 = vld [vmem:[%s1 + $0x20] sm:$0xff]
  %v225 = vld [vmem:[%s1 + $0x28] sm:$0xff]
  %v226 = vld [vmem:[%s1 + $0x30] sm:$0xff]
  %v227 = vld [vmem:[%s1 + $0x38] sm:$0xff]
  %v228 = vld [vmem:[%s1 + $0x40] sm:$0xff]
  %v229 = vld [vmem:[%s1 + $0x48] sm:$0xff]
  %v230 = vld [vmem:[%s1 + $0x50] sm:$0xff]
  %v231 = vld [vmem:[%s1 + $0x58] sm:$0xff]
  %v232 = vld [vmem:[%s1 + $0x60] sm:$0xff]
  %v233 = vld [vmem:[%s1 + $0x68] sm:$0xff]
  %v234 = vld [vmem:[%s1 + $0x70] sm:$0xff]
  %v235 = vld [vmem:[%s1 + $0x78] sm:$0xff]
  %v236 = vld [vmem:[%s1 + $0x80] sm:$0xff]
  %v237 = vld [vmem:[%s1 + $0x88] sm:$0xff]
  %v238 = vld [vmem:[%s2] sm:$0x1]
  %v240 = vlaneseq
  %v241 = vshrl.u32 %v240, 7
  %v242 = vsub.s32 0, %v241
  %v243 = vrot.slane %v238, %v242
  %vm245 = vcmask 130048
  %v247 = vsel %vm245, %v21, 0
  %v250 = vsel %vm245, %v23, 0
  %v253 = vsel %vm245, %v25, 0
  %v256 = vsel %vm245, %v27, 0
  %v259 = vsel %vm245, %v29, 0
  %v262 = vsel %vm245, %v31, 0
  %v265 = vsel %vm245, %v33, 0
  %v268 = vsel %vm245, %v35, 0
  %v271 = vsel %vm245, %v37, 0
  %v274 = vsel %vm245, %v39, 0
  %v277 = vsel %vm245, %v41, 0
  %v280 = vsel %vm245, %v43, 0
  %v283 = vsel %vm245, %v45, 0
  %v286 = vsel %vm245, %v47, 0
  %v289 = vsel %vm245, %v49, 0
  %v292 = vsel %vm245, %v51, 0
  %v295 = vsel %vm245, %v53, 0
  %v298 = vsel %vm245, %v55, 0
  %v301 = vsel %vm245, %v57, 0
  %v304 = vsel %vm245, %v59, 0
  %v307 = vsel %vm245, %v61, 0
  %v310 = vsel %vm245, %v63, 0
  %v313 = vsel %vm245, %v65, 0
  %v316 = vsel %vm245, %v67, 0
  %v319 = vsel %vm245, %v69, 0
  %v322 = vsel %vm245, %v71, 0
  %v325 = vsel %vm245, %v73, 0
  %v328 = vsel %vm245, %v75, 0
  %v331 = vsel %vm245, %v77, 0
  %v334 = vsel %vm245, %v79, 0
  %v337 = vsel %vm245, %v81, 0
  %v340 = vsel %vm245, %v83, 0
  %v343 = vsel %vm245, %v85, 0
  %v346 = vsel %vm245, %v87, 0
  %v349 = vsel %vm245, %v89, 0
  %v352 = vsel %vm245, %v91, 0
  %v355 = vsel %vm245, %v93, 0
  %v358 = vsel %vm245, %v95, 0
  %v361 = vsel %vm245, %v97, 0
  %v364 = vsel %vm245, %v99, 0
  %v367 = vsel %vm245, %v101, 0
  %v370 = vsel %vm245, %v103, 0
  %v373 = vsel %vm245, %v105, 0
  %v376 = vsel %vm245, %v107, 0
  %v379 = vsel %vm245, %v109, 0
  %v382 = vsel %vm245, %v111, 0
  %v385 = vsel %vm245, %v113, 0
  %v388 = vsel %vm245, %v115, 0
  %v391 = vsel %vm245, %v117, 0
  %v394 = vsel %vm245, %v119, 0
  %v397 = vsel %vm245, %v121, 0
  %v400 = vsel %vm245, %v123, 0
  %v403 = vsel %vm245, %v125, 0
  %v406 = vsel %vm245, %v127, 0
  %v409 = vsel %vm245, %v129, 0
  %v412 = vsel %vm245, %v131, 0
  %v415 = vsel %vm245, %v133, 0
  %v418 = vsel %vm245, %v135, 0
  %v421 = vsel %vm245, %v137, 0
  %v424 = vsel %vm245, %v139, 0
  %v427 = vsel %vm245, %v141, 0
  %v430 = vsel %vm245, %v143, 0
  %v433 = vsel %vm245, %v145, 0
  %v436 = vsel %vm245, %v147, 0
  %v439 = vsel %vm245, %v149, 0
  %v442 = vsel %vm245, %v151, 0
  %v445 = vsel %vm245, %v153, 0
  %v448 = vsel %vm245, %v155, 0
  %v451 = vsel %vm245, %v157, 0
  %v454 = vsel %vm245, %v159, 0
  %v457 = vsel %vm245, %v161, 0
  %v460 = vsel %vm245, %v163, 0
  %v463 = vsel %vm245, %v165, 0
  %v466 = vsel %vm245, %v167, 0
  %v469 = vsel %vm245, %v169, 0
  %v472 = vsel %vm245, %v171, 0
  %v475 = vsel %vm245, %v173, 0
  %v478 = vsel %vm245, %v175, 0
  %v481 = vsel %vm245, %v177, 0
  %v484 = vsel %vm245, %v179, 0
  %v487 = vsel %vm245, %v181, 0
  %v490 = vsel %vm245, %v183, 0
  %v493 = vsel %vm245, %v185, 0
  %v496 = vsel %vm245, %v187, 0
  %v499 = vsel %vm245, %v189, 0
  %v502 = vsel %vm245, %v191, 0
  %v505 = vsel %vm245, %v193, 0
  %v508 = vsel %vm245, %v195, 0
  %v511 = vsel %vm245, %v197, 0
  %v514 = vsel %vm245, %v199, 0
  %v517 = vsel %vm245, %v201, 0
  %v520 = vsel %vm245, %v203, 0
  %v523 = vsel %vm245, %v205, 0
  %v526 = vsel %vm245, %v207, 0
  %v529 = vsel %vm245, %v209, 0
  %v532 = vsel %vm245, %v211, 0
  %v535 = vsel %vm245, %v213, 0
  %v538 = vsel %vm245, %v215, 0
  %v541 = vsel %vm245, %v217, 0
  %v544 = vsel %vm245, %v219, 0
  %546 = vmatprep.subr.mxu0 0.0
  %547 = vmatpush1.msra.mxu0 %v220
  %548 = vmatprep.subr.mxu0 0.0
  %549 = vmatpush1.msra.mxu0 %v221
  %550 = vmatprep.subr.mxu0 0.0
  %551 = vmatpush1.msra.mxu0 %v222
  %552 = vmatprep.subr.mxu0 0.0
  %553 = vmatpush1.msra.mxu0 %v223
  %554 = vmatprep.subr.mxu0 0.0
  %555 = vmatpush1.msra.mxu0 %v224
  %556 = vmatprep.subr.mxu0 0.0
  %557 = vmatpush1.msra.mxu0 %v225
  %558 = vmatprep.subr.mxu0 0.0
  %559 = vmatpush1.msra.mxu0 %v226
  %560 = vmatprep.subr.mxu0 0.0
  %561 = vmatpush1.msra.mxu0 %v227
  %562 = vmatprep.subr.mxu0 0.0
  %563 = vmatpush1.msra.mxu0 %v228
  %564 = vmatprep.subr.mxu0 0.0
  %565 = vmatpush1.msra.mxu0 %v229
  %566 = vmatprep.subr.mxu0 0.0
  %567 = vmatpush1.msra.mxu0 %v230
  %568 = vmatprep.subr.mxu0 0.0
  %569 = vmatpush1.msra.mxu0 %v231
  %570 = vmatprep.subr.mxu0 0.0
  %571 = vmatpush1.msra.mxu0 %v232
  %572 = vmatprep.subr.mxu0 0.0
  %573 = vmatpush1.msra.mxu0 %v233
  %574 = vmatprep.subr.mxu0 0.0
  %575 = vmatpush1.msra.mxu0 %v234
  %576 = vmatprep.subr.mxu0 0.0
  %577 = vmatpush1.msra.mxu0 %v235
  %578 = vmatprep.subr.mxu0 0.0
  %579 = vmatpush1.msra.mxu0 %v236
  %580 = vmatprep.subr.mxu0 0.0
  %581 = vmatpush1.msra.mxu0 %v237
  %582 = vmatprep.subr.mxu0 0.0
  %583 = vmatpush1.msra.mxu0 0.0
  %584 = vmatprep.subr.mxu0 0.0
  %585 = vmatpush1.msra.mxu0 0.0
  %586 = vmatprep.subr.mxu0 0.0
  %587 = vmatpush1.msra.mxu0 0.0
  %588 = vmatprep.subr.mxu0 0.0
  %589 = vmatpush1.msra.mxu0 0.0
  %590 = vmatprep.subr.mxu0 0.0
  %591 = vmatpush1.msra.mxu0 0.0
  %592 = vmatprep.subr.mxu0 0.0
  %593 = vmatpush1.msra.mxu0 0.0
  %594 = vmatprep.subr.mxu0 0.0
  %595 = vmatpush1.msra.mxu0 0.0
  %596 = vmatprep.subr.mxu0 0.0
  %597 = vmatpush1.msra.mxu0 0.0
  %598 = vmatprep.subr.mxu0 0.0
  %599 = vmatpush1.msra.mxu0 0.0
  %600 = vmatprep.subr.mxu0 0.0
  %601 = vmatpush1.msra.mxu0 0.0
  %602 = vmatprep.subr.mxu0 0.0
  %603 = vmatpush1.msra.mxu0 0.0
  %604 = vmatprep.subr.mxu0 0.0
  %605 = vmatpush1.msra.mxu0 0.0
  %606 = vmatprep.subr.mxu0 0.0
  %607 = vmatpush1.msra.mxu0 0.0
  %608 = vmatprep.subr.mxu0 0.0
  %609 = vmatpush1.msra.mxu0 0.0
  %610 = vmatprep.mubr.f32.mxu0 %v247
  %611 = vmatmul.mubr.f32.gmra.mrb[0].mxu0 %v20
  %v612 = vpop.f32.mrb[0].mxu0
  %v613 = vadd.f32 %v243, %v612
  %v614 = vpop.f32.mrb[0].mxu0
  %615 = vmatprep.mubr.f32.mxu0 %v250
  %616 = vmatmul.mubr.f32.gmra.mrb[0].mxu0 %v22
  %v617 = vpop.f32.mrb[0].mxu0
  %v618 = vadd.f32 %v243, %v617
  %v619 = vpop.f32.mrb[0].mxu0
  %620 = vmatprep.mubr.f32.mxu0 %v253
  %621 = vmatmul.mubr.f32.gmra.mrb[0].mxu0 %v24
  %v622 = vpop.f32.mrb[0].mxu0
  %v623 = vadd.f32 %v243, %v622
  %v624 = vpop.f32.mrb[0].mxu0
  %625 = vmatprep.mubr.f32.mxu0 %v256
  %626 = vmatmul.mubr.f32.gmra.mrb[0].mxu0 %v26
  %v627 = vpop.f32.mrb[0].mxu0
  %v628 = vadd.f32 %v243, %v627
  %v629 = vpop.f32.mrb[0].mxu0
  %630 = vmatprep.mubr.f32.mxu0 %v259
  %631 = vmatmul.mubr.f32.gmra.mrb[0].mxu0 %v28
  %v632 = vpop.f32.mrb[0].mxu0
  %v633 = vadd.f32 %v243, %v632
  %v634 = vpop.f32.mrb[0].mxu0
  %635 = vmatprep.mubr.f32.mxu0 %v262
  %636 = vmatmul.mubr.f32.gmra.mrb[0].mxu0 %v30
  %v637 = vpop.f32.mrb[0].mxu0
  %v638 = vadd.f32 %v243, %v637
  %v639 = vpop.f32.mrb[0].mxu0
  %640 = vmatprep.mubr.f32.mxu0 %v265
  %641 = vmatmul.mubr.f32.gmra.mrb[0].mxu0 %v32
  %v642 = vpop.f32.mrb[0].mxu0
  %v643 = vadd.f32 %v243, %v642
  %v644 = vpop.f32.mrb[0].mxu0
  %645 = vmatprep.mubr.f32.mxu0 %v268
  %646 = vmatmul.mubr.f32.gmra.mrb[0].mxu0 %v34
  %v647 = vpop.f32.mrb[0].mxu0
  %v648 = vadd.f32 %v243, %v647
  %v649 = vpop.f32.mrb[0].mxu0
  %650 = vmatprep.mubr.f32.mxu0 %v271
  %651 = vmatmul.mubr.f32.gmra.mrb[0].mxu0 %v36
  %v652 = vpop.f32.mrb[0].mxu0
  %v653 = vadd.f32 %v243, %v652
  %v654 = vpop.f32.mrb[0].mxu0
  %655 = vmatprep.mubr.f32.mxu0 %v274
  %656 = vmatmul.mubr.f32.gmra.mrb[0].mxu0 %v38
  %v657 = vpop.f32.mrb[0].mxu0
  %v658 = vadd.f32 %v243, %v657
  %v659 = vpop.f32.mrb[0].mxu0
  %660 = vmatprep.mubr.f32.mxu0 %v277
  %661 = vmatmul.mubr.f32.gmra.mrb[0].mxu0 %v40
  %v662 = vpop.f32.mrb[0].mxu0
  %v663 = vadd.f32 %v243, %v662
  %v664 = vpop.f32.mrb[0].mxu0
  %665 = vmatprep.mubr.f32.mxu0 %v280
  %666 = vmatmul.mubr.f32.gmra.mrb[0].mxu0 %v42
  %v667 = vpop.f32.mrb[0].mxu0
  %v668 = vadd.f32 %v243, %v667
  %v669 = vpop.f32.mrb[0].mxu0
  %670 = vmatprep.mubr.f32.mxu0 %v283
  %671 = vmatmul.mubr.f32.gmra.mrb[0].mxu0 %v44
  %v672 = vpop.f32.mrb[0].mxu0
  %v673 = vadd.f32 %v243, %v672
  %v674 = vpop.f32.mrb[0].mxu0
  %675 = vmatprep.mubr.f32.mxu0 %v286
  %676 = vmatmul.mubr.f32.gmra.mrb[0].mxu0 %v46
  %v677 = vpop.f32.mrb[0].mxu0
  %v678 = vadd.f32 %v243, %v677
  %v679 = vpop.f32.mrb[0].mxu0
  %680 = vmatprep.mubr.f32.mxu0 %v289
  %681 = vmatmul.mubr.f32.gmra.mrb[0].mxu0 %v48
  %v682 = vpop.f32.mrb[0].mxu0
  %v683 = vadd.f32 %v243, %v682
  %v684 = vpop.f32.mrb[0].mxu0
  %685 = vmatprep.mubr.f32.mxu0 %v292
  %686 = vmatmul.mubr.f32.gmra.mrb[0].mxu0 %v50
  %v687 = vpop.f32.mrb[0].mxu0
  %v688 = vadd.f32 %v243, %v687
  %v689 = vpop.f32.mrb[0].mxu0
  %690 = vmatprep.mubr.f32.mxu0 %v295
  %691 = vmatmul.mubr.f32.gmra.mrb[0].mxu0 %v52
  %v692 = vpop.f32.mrb[0].mxu0
  %v693 = vadd.f32 %v243, %v692
  %v694 = vpop.f32.mrb[0].mxu0
  %695 = vmatprep.mubr.f32.mxu0 %v298
  %696 = vmatmul.mubr.f32.gmra.mrb[0].mxu0 %v54
  %v697 = vpop.f32.mrb[0].mxu0
  %v698 = vadd.f32 %v243, %v697
  %v699 = vpop.f32.mrb[0].mxu0
  %700 = vmatprep.mubr.f32.mxu0 %v301
  %701 = vmatmul.mubr.f32.gmra.mrb[0].mxu0 %v56
  %v702 = vpop.f32.mrb[0].mxu0
  %v703 = vadd.f32 %v243, %v702
  %v704 = vpop.f32.mrb[0].mxu0
  %705 = vmatprep.mubr.f32.mxu0 %v304
  %706 = vmatmul.mubr.f32.gmra.mrb[0].mxu0 %v58
  %v707 = vpop.f32.mrb[0].mxu0
  %v708 = vadd.f32 %v243, %v707
  %v709 = vpop.f32.mrb[0].mxu0
  %710 = vmatprep.mubr.f32.mxu0 %v307
  %711 = vmatmul.mubr.f32.gmra.mrb[0].mxu0 %v60
  %v712 = vpop.f32.mrb[0].mxu0
  %v713 = vadd.f32 %v243, %v712
  %v714 = vpop.f32.mrb[0].mxu0
  %715 = vmatprep.mubr.f32.mxu0 %v310
  %716 = vmatmul.mubr.f32.gmra.mrb[0].mxu0 %v62
  %v717 = vpop.f32.mrb[0].mxu0
  %v718 = vadd.f32 %v243, %v717
  %v719 = vpop.f32.mrb[0].mxu0
  %720 = vmatprep.mubr.f32.mxu0 %v313
  %721 = vmatmul.mubr.f32.gmra.mrb[0].mxu0 %v64
  %v722 = vpop.f32.mrb[0].mxu0
  %v723 = vadd.f32 %v243, %v722
  %v724 = vpop.f32.mrb[0].mxu0
  %725 = vmatprep.mubr.f32.mxu0 %v316
  %726 = vmatmul.mubr.f32.gmra.mrb[0].mxu0 %v66
  %v727 = vpop.f32.mrb[0].mxu0
  %v728 = vadd.f32 %v243, %v727
  %v729 = vpop.f32.mrb[0].mxu0
  %730 = vmatprep.mubr.f32.mxu0 %v319
  %731 = vmatmul.mubr.f32.gmra.mrb[0].mxu0 %v68
  %v732 = vpop.f32.mrb[0].mxu0
  %v733 = vadd.f32 %v243, %v732
  %v734 = vpop.f32.mrb[0].mxu0
  %735 = vmatprep.mubr.f32.mxu0 %v322
  %736 = vmatmul.mubr.f32.gmra.mrb[0].mxu0 %v70
  %v737 = vpop.f32.mrb[0].mxu0
  %v738 = vadd.f32 %v243, %v737
  %v739 = vpop.f32.mrb[0].mxu0
  %740 = vmatprep.mubr.f32.mxu0 %v325
  %741 = vmatmul.mubr.f32.gmra.mrb[0].mxu0 %v72
  %v742 = vpop.f32.mrb[0].mxu0
  %v743 = vadd.f32 %v243, %v742
  %v744 = vpop.f32.mrb[0].mxu0
  %745 = vmatprep.mubr.f32.mxu0 %v328
  %746 = vmatmul.mubr.f32.gmra.mrb[0].mxu0 %v74
  %v747 = vpop.f32.mrb[0].mxu0
  %v748 = vadd.f32 %v243, %v747
  %v749 = vpop.f32.mrb[0].mxu0
  %750 = vmatprep.mubr.f32.mxu0 %v331
  %751 = vmatmul.mubr.f32.gmra.mrb[0].mxu0 %v76
  %v752 = vpop.f32.mrb[0].mxu0
  %v753 = vadd.f32 %v243, %v752
  %v754 = vpop.f32.mrb[0].mxu0
  %755 = vmatprep.mubr.f32.mxu0 %v334
  %756 = vmatmul.mubr.f32.gmra.mrb[0].mxu0 %v78
  %v757 = vpop.f32.mrb[0].mxu0
  %v758 = vadd.f32 %v243, %v757
  %v759 = vpop.f32.mrb[0].mxu0
  %760 = vmatprep.mubr.f32.mxu0 %v337
  %761 = vmatmul.mubr.f32.gmra.mrb[0].mxu0 %v80
  %v762 = vpop.f32.mrb[0].mxu0
  %v763 = vadd.f32 %v243, %v762
  %v764 = vpop.f32.mrb[0].mxu0
  %765 = vmatprep.mubr.f32.mxu0 %v340
  %766 = vmatmul.mubr.f32.gmra.mrb[0].mxu0 %v82
  %v767 = vpop.f32.mrb[0].mxu0
  %v768 = vadd.f32 %v243, %v767
  %v769 = vpop.f32.mrb[0].mxu0
  %770 = vmatprep.mubr.f32.mxu0 %v343
  %771 = vmatmul.mubr.f32.gmra.mrb[0].mxu0 %v84
  %v772 = vpop.f32.mrb[0].mxu0
  %v773 = vadd.f32 %v243, %v772
  %v774 = vpop.f32.mrb[0].mxu0
  %775 = vmatprep.mubr.f32.mxu0 %v346
  %776 = vmatmul.mubr.f32.gmra.mrb[0].mxu0 %v86
  %v777 = vpop.f32.mrb[0].mxu0
  %v778 = vadd.f32 %v243, %v777
  %v779 = vpop.f32.mrb[0].mxu0
  %780 = vmatprep.mubr.f32.mxu0 %v349
  %781 = vmatmul.mubr.f32.gmra.mrb[0].mxu0 %v88
  %v782 = vpop.f32.mrb[0].mxu0
  %v783 = vadd.f32 %v243, %v782
  %v784 = vpop.f32.mrb[0].mxu0
  %785 = vmatprep.mubr.f32.mxu0 %v352
  %786 = vmatmul.mubr.f32.gmra.mrb[0].mxu0 %v90
  %v787 = vpop.f32.mrb[0].mxu0
  %v788 = vadd.f32 %v243, %v787
  %v789 = vpop.f32.mrb[0].mxu0
  %790 = vmatprep.mubr.f32.mxu0 %v355
  %791 = vmatmul.mubr.f32.gmra.mrb[0].mxu0 %v92
  %v792 = vpop.f32.mrb[0].mxu0
  %v793 = vadd.f32 %v243, %v792
  %v794 = vpop.f32.mrb[0].mxu0
  %795 = vmatprep.mubr.f32.mxu0 %v358
  %796 = vmatmul.mubr.f32.gmra.mrb[0].mxu0 %v94
  %v797 = vpop.f32.mrb[0].mxu0
  %v798 = vadd.f32 %v243, %v797
  %v799 = vpop.f32.mrb[0].mxu0
  %800 = vmatprep.mubr.f32.mxu0 %v361
  %801 = vmatmul.mubr.f32.gmra.mrb[0].mxu0 %v96
  %v802 = vpop.f32.mrb[0].mxu0
  %v803 = vadd.f32 %v243, %v802
  %v804 = vpop.f32.mrb[0].mxu0
  %805 = vmatprep.mubr.f32.mxu0 %v364
  %806 = vmatmul.mubr.f32.gmra.mrb[0].mxu0 %v98
  %v807 = vpop.f32.mrb[0].mxu0
  %v808 = vadd.f32 %v243, %v807
  %v809 = vpop.f32.mrb[0].mxu0
  %810 = vmatprep.mubr.f32.mxu0 %v367
  %811 = vmatmul.mubr.f32.gmra.mrb[0].mxu0 %v100
  %v812 = vpop.f32.mrb[0].mxu0
  %v813 = vadd.f32 %v243, %v812
  %v814 = vpop.f32.mrb[0].mxu0
  %815 = vmatprep.mubr.f32.mxu0 %v370
  %816 = vmatmul.mubr.f32.gmra.mrb[0].mxu0 %v102
  %v817 = vpop.f32.mrb[0].mxu0
  %v818 = vadd.f32 %v243, %v817
  %v819 = vpop.f32.mrb[0].mxu0
  %820 = vmatprep.mubr.f32.mxu0 %v373
  %821 = vmatmul.mubr.f32.gmra.mrb[0].mxu0 %v104
  %v822 = vpop.f32.mrb[0].mxu0
  %v823 = vadd.f32 %v243, %v822
  %v824 = vpop.f32.mrb[0].mxu0
  %825 = vmatprep.mubr.f32.mxu0 %v376
  %826 = vmatmul.mubr.f32.gmra.mrb[0].mxu0 %v106
  %v827 = vpop.f32.mrb[0].mxu0
  %v828 = vadd.f32 %v243, %v827
  %v829 = vpop.f32.mrb[0].mxu0
  %830 = vmatprep.mubr.f32.mxu0 %v379
  %831 = vmatmul.mubr.f32.gmra.mrb[0].mxu0 %v108
  %v832 = vpop.f32.mrb[0].mxu0
  %v833 = vadd.f32 %v243, %v832
  %v834 = vpop.f32.mrb[0].mxu0
  %835 = vmatprep.mubr.f32.mxu0 %v382
  %836 = vmatmul.mubr.f32.gmra.mrb[0].mxu0 %v110
  %v837 = vpop.f32.mrb[0].mxu0
  %v838 = vadd.f32 %v243, %v837
  %v839 = vpop.f32.mrb[0].mxu0
  %840 = vmatprep.mubr.f32.mxu0 %v385
  %841 = vmatmul.mubr.f32.gmra.mrb[0].mxu0 %v112
  %v842 = vpop.f32.mrb[0].mxu0
  %v843 = vadd.f32 %v243, %v842
  %v844 = vpop.f32.mrb[0].mxu0
  %845 = vmatprep.mubr.f32.mxu0 %v388
  %846 = vmatmul.mubr.f32.gmra.mrb[0].mxu0 %v114
  %v847 = vpop.f32.mrb[0].mxu0
  %v848 = vadd.f32 %v243, %v847
  %v849 = vpop.f32.mrb[0].mxu0
  %850 = vmatprep.mubr.f32.mxu0 %v391
  %851 = vmatmul.mubr.f32.gmra.mrb[0].mxu0 %v116
  %v852 = vpop.f32.mrb[0].mxu0
  %v853 = vadd.f32 %v243, %v852
  %v854 = vpop.f32.mrb[0].mxu0
  %855 = vmatprep.mubr.f32.mxu0 %v394
  %856 = vmatmul.mubr.f32.gmra.mrb[0].mxu0 %v118
  %v857 = vpop.f32.mrb[0].mxu0
  %v858 = vadd.f32 %v243, %v857
  %v859 = vpop.f32.mrb[0].mxu0
  %860 = vmatprep.mubr.f32.mxu0 %v397
  %861 = vmatmul.mubr.f32.gmra.mrb[0].mxu0 %v120
  %v862 = vpop.f32.mrb[0].mxu0
  %v863 = vadd.f32 %v243, %v862
  %v864 = vpop.f32.mrb[0].mxu0
  %865 = vmatprep.mubr.f32.mxu0 %v400
  %866 = vmatmul.mubr.f32.gmra.mrb[0].mxu0 %v122
  %v867 = vpop.f32.mrb[0].mxu0
  %v868 = vadd.f32 %v243, %v867
  %v869 = vpop.f32.mrb[0].mxu0
  %870 = vmatprep.mubr.f32.mxu0 %v403
  %871 = vmatmul.mubr.f32.gmra.mrb[0].mxu0 %v124
  %v872 = vpop.f32.mrb[0].mxu0
  %v873 = vadd.f32 %v243, %v872
  %v874 = vpop.f32.mrb[0].mxu0
  %875 = vmatprep.mubr.f32.mxu0 %v406
  %876 = vmatmul.mubr.f32.gmra.mrb[0].mxu0 %v126
  %v877 = vpop.f32.mrb[0].mxu0
  %v878 = vadd.f32 %v243, %v877
  %v879 = vpop.f32.mrb[0].mxu0
  %880 = vmatprep.mubr.f32.mxu0 %v409
  %881 = vmatmul.mubr.f32.gmra.mrb[0].mxu0 %v128
  %v882 = vpop.f32.mrb[0].mxu0
  %v883 = vadd.f32 %v243, %v882
  %v884 = vpop.f32.mrb[0].mxu0
  %885 = vmatprep.mubr.f32.mxu0 %v412
  %886 = vmatmul.mubr.f32.gmra.mrb[0].mxu0 %v130
  %v887 = vpop.f32.mrb[0].mxu0
  %v888 = vadd.f32 %v243, %v887
  %v889 = vpop.f32.mrb[0].mxu0
  %890 = vmatprep.mubr.f32.mxu0 %v415
  %891 = vmatmul.mubr.f32.gmra.mrb[0].mxu0 %v132
  %v892 = vpop.f32.mrb[0].mxu0
  %v893 = vadd.f32 %v243, %v892
  %v894 = vpop.f32.mrb[0].mxu0
  %895 = vmatprep.mubr.f32.mxu0 %v418
  %896 = vmatmul.mubr.f32.gmra.mrb[0].mxu0 %v134
  %v897 = vpop.f32.mrb[0].mxu0
  %v898 = vadd.f32 %v243, %v897
  %v899 = vpop.f32.mrb[0].mxu0
  %900 = vmatprep.mubr.f32.mxu0 %v421
  %901 = vmatmul.mubr.f32.gmra.mrb[0].mxu0 %v136
  %v902 = vpop.f32.mrb[0].mxu0
  %v903 = vadd.f32 %v243, %v902
  %v904 = vpop.f32.mrb[0].mxu0
  %905 = vmatprep.mubr.f32.mxu0 %v424
  %906 = vmatmul.mubr.f32.gmra.mrb[0].mxu0 %v138
  %v907 = vpop.f32.mrb[0].mxu0
  %v908 = vadd.f32 %v243, %v907
  %v909 = vpop.f32.mrb[0].mxu0
  %910 = vmatprep.mubr.f32.mxu0 %v427
  %911 = vmatmul.mubr.f32.gmra.mrb[0].mxu0 %v140
  %v912 = vpop.f32.mrb[0].mxu0
  %v913 = vadd.f32 %v243, %v912
  %v914 = vpop.f32.mrb[0].mxu0
  %915 = vmatprep.mubr.f32.mxu0 %v430
  %916 = vmatmul.mubr.f32.gmra.mrb[0].mxu0 %v142
  %v917 = vpop.f32.mrb[0].mxu0
  %v918 = vadd.f32 %v243, %v917
  %v919 = vpop.f32.mrb[0].mxu0
  %920 = vmatprep.mubr.f32.mxu0 %v433
  %921 = vmatmul.mubr.f32.gmra.mrb[0].mxu0 %v144
  %v922 = vpop.f32.mrb[0].mxu0
  %v923 = vadd.f32 %v243, %v922
  %v924 = vpop.f32.mrb[0].mxu0
  %925 = vmatprep.mubr.f32.mxu0 %v436
  %926 = vmatmul.mubr.f32.gmra.mrb[0].mxu0 %v146
  %v927 = vpop.f32.mrb[0].mxu0
  %v928 = vadd.f32 %v243, %v927
  %v929 = vpop.f32.mrb[0].mxu0
  %930 = vmatprep.mubr.f32.mxu0 %v439
  %931 = vmatmul.mubr.f32.gmra.mrb[0].mxu0 %v148
  %v932 = vpop.f32.mrb[0].mxu0
  %v933 = vadd.f32 %v243, %v932
  %v934 = vpop.f32.mrb[0].mxu0
  %935 = vmatprep.mubr.f32.mxu0 %v442
  %936 = vmatmul.mubr.f32.gmra.mrb[0].mxu0 %v150
  %v937 = vpop.f32.mrb[0].mxu0
  %v938 = vadd.f32 %v243, %v937
  %v939 = vpop.f32.mrb[0].mxu0
  %940 = vmatprep.mubr.f32.mxu0 %v445
  %941 = vmatmul.mubr.f32.gmra.mrb[0].mxu0 %v152
  %v942 = vpop.f32.mrb[0].mxu0
  %v943 = vadd.f32 %v243, %v942
  %v944 = vpop.f32.mrb[0].mxu0
  %945 = vmatprep.mubr.f32.mxu0 %v448
  %946 = vmatmul.mubr.f32.gmra.mrb[0].mxu0 %v154
  %v947 = vpop.f32.mrb[0].mxu0
  %v948 = vadd.f32 %v243, %v947
  %v949 = vpop.f32.mrb[0].mxu0
  %950 = vmatprep.mubr.f32.mxu0 %v451
  %951 = vmatmul.mubr.f32.gmra.mrb[0].mxu0 %v156
  %v952 = vpop.f32.mrb[0].mxu0
  %v953 = vadd.f32 %v243, %v952
  %v954 = vpop.f32.mrb[0].mxu0
  %955 = vmatprep.mubr.f32.mxu0 %v454
  %956 = vmatmul.mubr.f32.gmra.mrb[0].mxu0 %v158
  %v957 = vpop.f32.mrb[0].mxu0
  %v958 = vadd.f32 %v243, %v957
  %v959 = vpop.f32.mrb[0].mxu0
  %960 = vmatprep.mubr.f32.mxu0 %v457
  %961 = vmatmul.mubr.f32.gmra.mrb[0].mxu0 %v160
  %v962 = vpop.f32.mrb[0].mxu0
  %v963 = vadd.f32 %v243, %v962
  %v964 = vpop.f32.mrb[0].mxu0
  %965 = vmatprep.mubr.f32.mxu0 %v460
  %966 = vmatmul.mubr.f32.gmra.mrb[0].mxu0 %v162
  %v967 = vpop.f32.mrb[0].mxu0
  %v968 = vadd.f32 %v243, %v967
  %v969 = vpop.f32.mrb[0].mxu0
  %970 = vmatprep.mubr.f32.mxu0 %v463
  %971 = vmatmul.mubr.f32.gmra.mrb[0].mxu0 %v164
  %v972 = vpop.f32.mrb[0].mxu0
  %v973 = vadd.f32 %v243, %v972
  %v974 = vpop.f32.mrb[0].mxu0
  %975 = vmatprep.mubr.f32.mxu0 %v466
  %976 = vmatmul.mubr.f32.gmra.mrb[0].mxu0 %v166
  %v977 = vpop.f32.mrb[0].mxu0
  %v978 = vadd.f32 %v243, %v977
  %v979 = vpop.f32.mrb[0].mxu0
  %980 = vmatprep.mubr.f32.mxu0 %v469
  %981 = vmatmul.mubr.f32.gmra.mrb[0].mxu0 %v168
  %v982 = vpop.f32.mrb[0].mxu0
  %v983 = vadd.f32 %v243, %v982
  %v984 = vpop.f32.mrb[0].mxu0
  %985 = vmatprep.mubr.f32.mxu0 %v472
  %986 = vmatmul.mubr.f32.gmra.mrb[0].mxu0 %v170
  %v987 = vpop.f32.mrb[0].mxu0
  %v988 = vadd.f32 %v243, %v987
  %v989 = vpop.f32.mrb[0].mxu0
  %990 = vmatprep.mubr.f32.mxu0 %v475
  %991 = vmatmul.mubr.f32.gmra.mrb[0].mxu0 %v172
  %v992 = vpop.f32.mrb[0].mxu0
  %v993 = vadd.f32 %v243, %v992
  %v994 = vpop.f32.mrb[0].mxu0
  %995 = vmatprep.mubr.f32.mxu0 %v478
  %996 = vmatmul.mubr.f32.gmra.mrb[0].mxu0 %v174
  %v997 = vpop.f32.mrb[0].mxu0
  %v998 = vadd.f32 %v243, %v997
  %v999 = vpop.f32.mrb[0].mxu0
  %1000 = vmatprep.mubr.f32.mxu0 %v481
  %1001 = vmatmul.mubr.f32.gmra.mrb[0].mxu0 %v176
  %v1002 = vpop.f32.mrb[0].mxu0
  %v1003 = vadd.f32 %v243, %v1002
  %v1004 = vpop.f32.mrb[0].mxu0
  %1005 = vmatprep.mubr.f32.mxu0 %v484
  %1006 = vmatmul.mubr.f32.gmra.mrb[0].mxu0 %v178
  %v1007 = vpop.f32.mrb[0].mxu0
  %v1008 = vadd.f32 %v243, %v1007
  %v1009 = vpop.f32.mrb[0].mxu0
  %1010 = vmatprep.mubr.f32.mxu0 %v487
  %1011 = vmatmul.mubr.f32.gmra.mrb[0].mxu0 %v180
  %v1012 = vpop.f32.mrb[0].mxu0
  %v1013 = vadd.f32 %v243, %v1012
  %v1014 = vpop.f32.mrb[0].mxu0
  %1015 = vmatprep.mubr.f32.mxu0 %v490
  %1016 = vmatmul.mubr.f32.gmra.mrb[0].mxu0 %v182
  %v1017 = vpop.f32.mrb[0].mxu0
  %v1018 = vadd.f32 %v243, %v1017
  %v1019 = vpop.f32.mrb[0].mxu0
  %1020 = vmatprep.mubr.f32.mxu0 %v493
  %1021 = vmatmul.mubr.f32.gmra.mrb[0].mxu0 %v184
  %v1022 = vpop.f32.mrb[0].mxu0
  %v1023 = vadd.f32 %v243, %v1022
  %v1024 = vpop.f32.mrb[0].mxu0
  %1025 = vmatprep.mubr.f32.mxu0 %v496
  %1026 = vmatmul.mubr.f32.gmra.mrb[0].mxu0 %v186
  %v1027 = vpop.f32.mrb[0].mxu0
  %v1028 = vadd.f32 %v243, %v1027
  %v1029 = vpop.f32.mrb[0].mxu0
  %1030 = vmatprep.mubr.f32.mxu0 %v499
  %1031 = vmatmul.mubr.f32.gmra.mrb[0].mxu0 %v188
  %v1032 = vpop.f32.mrb[0].mxu0
  %v1033 = vadd.f32 %v243, %v1032
  %v1034 = vpop.f32.mrb[0].mxu0
  %1035 = vmatprep.mubr.f32.mxu0 %v502
  %1036 = vmatmul.mubr.f32.gmra.mrb[0].mxu0 %v190
  %v1037 = vpop.f32.mrb[0].mxu0
  %v1038 = vadd.f32 %v243, %v1037
  %v1039 = vpop.f32.mrb[0].mxu0
  %1040 = vmatprep.mubr.f32.mxu0 %v505
  %1041 = vmatmul.mubr.f32.gmra.mrb[0].mxu0 %v192
  %v1042 = vpop.f32.mrb[0].mxu0
  %v1043 = vadd.f32 %v243, %v1042
  %v1044 = vpop.f32.mrb[0].mxu0
  %1045 = vmatprep.mubr.f32.mxu0 %v508
  %1046 = vmatmul.mubr.f32.gmra.mrb[0].mxu0 %v194
  %v1047 = vpop.f32.mrb[0].mxu0
  %v1048 = vadd.f32 %v243, %v1047
  %v1049 = vpop.f32.mrb[0].mxu0
  %1050 = vmatprep.mubr.f32.mxu0 %v511
  %1051 = vmatmul.mubr.f32.gmra.mrb[0].mxu0 %v196
  %v1052 = vpop.f32.mrb[0].mxu0
  %v1053 = vadd.f32 %v243, %v1052
  %v1054 = vpop.f32.mrb[0].mxu0
  %1055 = vmatprep.mubr.f32.mxu0 %v514
  %1056 = vmatmul.mubr.f32.gmra.mrb[0].mxu0 %v198
  %v1057 = vpop.f32.mrb[0].mxu0
  %v1058 = vadd.f32 %v243, %v1057
  %v1059 = vpop.f32.mrb[0].mxu0
  %1060 = vmatprep.mubr.f32.mxu0 %v517
  %1061 = vmatmul.mubr.f32.gmra.mrb[0].mxu0 %v200
  %v1062 = vpop.f32.mrb[0].mxu0
  %v1063 = vadd.f32 %v243, %v1062
  %v1064 = vpop.f32.mrb[0].mxu0
  %1065 = vmatprep.mubr.f32.mxu0 %v520
  %1066 = vmatmul.mubr.f32.gmra.mrb[0].mxu0 %v202
  %v1067 = vpop.f32.mrb[0].mxu0
  %v1068 = vadd.f32 %v243, %v1067
  %v1069 = vpop.f32.mrb[0].mxu0
  %1070 = vmatprep.mubr.f32.mxu0 %v523
  %1071 = vmatmul.mubr.f32.gmra.mrb[0].mxu0 %v204
  %v1072 = vpop.f32.mrb[0].mxu0
  %v1073 = vadd.f32 %v243, %v1072
  %v1074 = vpop.f32.mrb[0].mxu0
  %1075 = vmatprep.mubr.f32.mxu0 %v526
  %1076 = vmatmul.mubr.f32.gmra.mrb[0].mxu0 %v206
  %v1077 = vpop.f32.mrb[0].mxu0
  %v1078 = vadd.f32 %v243, %v1077
  %v1079 = vpop.f32.mrb[0].mxu0
  %1080 = vmatprep.mubr.f32.mxu0 %v529
  %1081 = vmatmul.mubr.f32.gmra.mrb[0].mxu0 %v208
  %v1082 = vpop.f32.mrb[0].mxu0
  %v1083 = vadd.f32 %v243, %v1082
  %v1084 = vpop.f32.mrb[0].mxu0
  %1085 = vmatprep.mubr.f32.mxu0 %v532
  %1086 = vmatmul.mubr.f32.gmra.mrb[0].mxu0 %v210
  %v1087 = vpop.f32.mrb[0].mxu0
  %v1088 = vadd.f32 %v243, %v1087
  %v1089 = vpop.f32.mrb[0].mxu0
  %1090 = vmatprep.mubr.f32.mxu0 %v535
  %1091 = vmatmul.mubr.f32.gmra.mrb[0].mxu0 %v212
  %v1092 = vpop.f32.mrb[0].mxu0
  %v1093 = vadd.f32 %v243, %v1092
  %v1094 = vpop.f32.mrb[0].mxu0
  %1095 = vmatprep.mubr.f32.mxu0 %v538
  %1096 = vmatmul.mubr.f32.gmra.mrb[0].mxu0 %v214
  %v1097 = vpop.f32.mrb[0].mxu0
  %v1098 = vadd.f32 %v243, %v1097
  %v1099 = vpop.f32.mrb[0].mxu0
  %1100 = vmatprep.mubr.f32.mxu0 %v541
  %1101 = vmatmul.mubr.f32.gmra.mrb[0].mxu0 %v216
  %v1102 = vpop.f32.mrb[0].mxu0
  %v1103 = vadd.f32 %v243, %v1102
  %v1104 = vpop.f32.mrb[0].mxu0
  %1105 = vmatprep.mubr.f32.mxu0 %v544
  %1106 = vmatmul.mubr.f32.gmra.mrb[0].mxu0 %v218
  %v1107 = vpop.f32.mrb[0].mxu0
  %v1108 = vadd.f32 %v243, %v1107
  %v1109 = vpop.f32.mrb[0].mxu0
  %1110 = vdwg.mxu0
  %v1111 = vmax.f32 %v613, 0.0
  %v1112 = vmax.f32 %v618, 0.0
  %v1113 = vmax.f32 %v623, 0.0
  %v1114 = vmax.f32 %v628, 0.0
  %v1115 = vmax.f32 %v633, 0.0
  %v1116 = vmax.f32 %v638, 0.0
  %v1117 = vmax.f32 %v643, 0.0
  %v1118 = vmax.f32 %v648, 0.0
  %v1119 = vmax.f32 %v653, 0.0
  %v1120 = vmax.f32 %v658, 0.0
  %v1121 = vmax.f32 %v663, 0.0
  %v1122 = vmax.f32 %v668, 0.0
  %v1123 = vmax.f32 %v673, 0.0
  %v1124 = vmax.f32 %v678, 0.0
  %v1125 = vmax.f32 %v683, 0.0
  %v1126 = vmax.f32 %v688, 0.0
  %v1127 = vmax.f32 %v693, 0.0
  %v1128 = vmax.f32 %v698, 0.0
  %v1129 = vmax.f32 %v703, 0.0
  %v1130 = vmax.f32 %v708, 0.0
  %v1131 = vmax.f32 %v713, 0.0
  %v1132 = vmax.f32 %v718, 0.0
  %v1133 = vmax.f32 %v723, 0.0
  %v1134 = vmax.f32 %v728, 0.0
  %v1135 = vmax.f32 %v733, 0.0
  %v1136 = vmax.f32 %v738, 0.0
  %v1137 = vmax.f32 %v743, 0.0
  %v1138 = vmax.f32 %v748, 0.0
  %v1139 = vmax.f32 %v753, 0.0
  %v1140 = vmax.f32 %v758, 0.0
  %v1141 = vmax.f32 %v763, 0.0
  %v1142 = vmax.f32 %v768, 0.0
  %v1143 = vmax.f32 %v773, 0.0
  %v1144 = vmax.f32 %v778, 0.0
  %v1145 = vmax.f32 %v783, 0.0
  %v1146 = vmax.f32 %v788, 0.0
  %v1147 = vmax.f32 %v793, 0.0
  %v1148 = vmax.f32 %v798, 0.0
  %v1149 = vmax.f32 %v803, 0.0
  %v1150 = vmax.f32 %v808, 0.0
  %v1151 = vmax.f32 %v813, 0.0
  %v1152 = vmax.f32 %v818, 0.0
  %v1153 = vmax.f32 %v823, 0.0
  %v1154 = vmax.f32 %v828, 0.0
  %v1155 = vmax.f32 %v833, 0.0
  %v1156 = vmax.f32 %v838, 0.0
  %v1157 = vmax.f32 %v843, 0.0
  %v1158 = vmax.f32 %v848, 0.0
  %v1159 = vmax.f32 %v853, 0.0
  %v1160 = vmax.f32 %v858, 0.0
  %v1161 = vmax.f32 %v863, 0.0
  %v1162 = vmax.f32 %v868, 0.0
  %v1163 = vmax.f32 %v873, 0.0
  %v1164 = vmax.f32 %v878, 0.0
  %v1165 = vmax.f32 %v883, 0.0
  %v1166 = vmax.f32 %v888, 0.0
  %v1167 = vmax.f32 %v893, 0.0
  %v1168 = vmax.f32 %v898, 0.0
  %v1169 = vmax.f32 %v903, 0.0
  %v1170 = vmax.f32 %v908, 0.0
  %v1171 = vmax.f32 %v913, 0.0
  %v1172 = vmax.f32 %v918, 0.0
  %v1173 = vmax.f32 %v923, 0.0
  %v1174 = vmax.f32 %v928, 0.0
  %v1175 = vmax.f32 %v933, 0.0
  %v1176 = vmax.f32 %v938, 0.0
  %v1177 = vmax.f32 %v943, 0.0
  %v1178 = vmax.f32 %v948, 0.0
  %v1179 = vmax.f32 %v953, 0.0
  %v1180 = vmax.f32 %v958, 0.0
  %v1181 = vmax.f32 %v963, 0.0
  %v1182 = vmax.f32 %v968, 0.0
  %v1183 = vmax.f32 %v973, 0.0
  %v1184 = vmax.f32 %v978, 0.0
  %v1185 = vmax.f32 %v983, 0.0
  %v1186 = vmax.f32 %v988, 0.0
  %v1187 = vmax.f32 %v993, 0.0
  %v1188 = vmax.f32 %v998, 0.0
  %v1189 = vmax.f32 %v1003, 0.0
  %v1190 = vmax.f32 %v1008, 0.0
  %v1191 = vmax.f32 %v1013, 0.0
  %v1192 = vmax.f32 %v1018, 0.0
  %v1193 = vmax.f32 %v1023, 0.0
  %v1194 = vmax.f32 %v1028, 0.0
  %v1195 = vmax.f32 %v1033, 0.0
  %v1196 = vmax.f32 %v1038, 0.0
  %v1197 = vmax.f32 %v1043, 0.0
  %v1198 = vmax.f32 %v1048, 0.0
  %v1199 = vmax.f32 %v1053, 0.0
  %v1200 = vmax.f32 %v1058, 0.0
  %v1201 = vmax.f32 %v1063, 0.0
  %v1202 = vmax.f32 %v1068, 0.0
  %v1203 = vmax.f32 %v1073, 0.0
  %v1204 = vmax.f32 %v1078, 0.0
  %v1205 = vmax.f32 %v1083, 0.0
  %v1206 = vmax.f32 %v1088, 0.0
  %v1207 = vmax.f32 %v1093, 0.0
  %v1208 = vmax.f32 %v1098, 0.0
  %v1209 = vmax.f32 %v1103, 0.0
  %v1210 = vmax.f32 %v1108, 0.0
  %v1211 = vmax.f32 %v1111, %v1136
  %v1212 = vmax.f32 %v1112, %v1137
  %v1213 = vmax.f32 %v1113, %v1138
  %v1214 = vmax.f32 %v1114, %v1139
  %v1215 = vmax.f32 %v1115, %v1140
  %v1216 = vmax.f32 %v1116, %v1141
  %v1217 = vmax.f32 %v1117, %v1142
  %v1218 = vmax.f32 %v1118, %v1143
  %v1219 = vmax.f32 %v1119, %v1144
  %v1220 = vmax.f32 %v1120, %v1145
  %v1221 = vmax.f32 %v1121, %v1146
  %v1222 = vmax.f32 %v1122, %v1147
  %v1223 = vmax.f32 %v1123, %v1148
  %v1224 = vmax.f32 %v1124, %v1149
  %v1225 = vmax.f32 %v1125, %v1150
  %v1226 = vmax.f32 %v1126, %v1151
  %v1227 = vmax.f32 %v1127, %v1152
  %v1228 = vmax.f32 %v1128, %v1153
  %v1229 = vmax.f32 %v1129, %v1154
  %v1230 = vmax.f32 %v1130, %v1155
  %v1231 = vmax.f32 %v1131, %v1156
  %v1232 = vmax.f32 %v1132, %v1157
  %v1233 = vmax.f32 %v1133, %v1158
  %v1234 = vmax.f32 %v1134, %v1159
  %v1235 = vmax.f32 %v1135, %v1160
  %v1236 = vmax.f32 %v1161, %v1186
  %v1237 = vmax.f32 %v1162, %v1187
  %v1238 = vmax.f32 %v1163, %v1188
  %v1239 = vmax.f32 %v1164, %v1189
  %v1240 = vmax.f32 %v1165, %v1190
  %v1241 = vmax.f32 %v1166, %v1191
  %v1242 = vmax.f32 %v1167, %v1192
  %v1243 = vmax.f32 %v1168, %v1193
  %v1244 = vmax.f32 %v1169, %v1194
  %v1245 = vmax.f32 %v1170, %v1195
  %v1246 = vmax.f32 %v1171, %v1196
  %v1247 = vmax.f32 %v1172, %v1197
  %v1248 = vmax.f32 %v1173, %v1198
  %v1249 = vmax.f32 %v1174, %v1199
  %v1250 = vmax.f32 %v1175, %v1200
  %v1251 = vmax.f32 %v1176, %v1201
  %v1252 = vmax.f32 %v1177, %v1202
  %v1253 = vmax.f32 %v1178, %v1203
  %v1254 = vmax.f32 %v1179, %v1204
  %v1255 = vmax.f32 %v1180, %v1205
  %v1256 = vmax.f32 %v1181, %v1206
  %v1257 = vmax.f32 %v1182, %v1207
  %v1258 = vmax.f32 %v1183, %v1208
  %v1259 = vmax.f32 %v1184, %v1209
  %v1260 = vmax.f32 %v1185, %v1210
  %v1261 = vmax.f32 %v1211, %v1236
  %v1262 = vmax.f32 %v1212, %v1237
  %v1263 = vmax.f32 %v1213, %v1238
  %v1264 = vmax.f32 %v1214, %v1239
  %v1265 = vmax.f32 %v1215, %v1240
  %v1266 = vmax.f32 %v1216, %v1241
  %v1267 = vmax.f32 %v1217, %v1242
  %v1268 = vmax.f32 %v1218, %v1243
  %v1269 = vmax.f32 %v1219, %v1244
  %v1270 = vmax.f32 %v1220, %v1245
  %v1271 = vmax.f32 %v1221, %v1246
  %v1272 = vmax.f32 %v1222, %v1247
  %v1273 = vmax.f32 %v1223, %v1248
  %v1274 = vmax.f32 %v1224, %v1249
  %v1275 = vmax.f32 %v1225, %v1250
  %v1276 = vmax.f32 %v1226, %v1251
  %v1277 = vmax.f32 %v1227, %v1252
  %v1278 = vmax.f32 %v1228, %v1253
  %v1279 = vmax.f32 %v1229, %v1254
  %v1280 = vmax.f32 %v1230, %v1255
  %v1281 = vmax.f32 %v1231, %v1256
  %v1282 = vmax.f32 %v1232, %v1257
  %v1283 = vmax.f32 %v1233, %v1258
  %v1284 = vmax.f32 %v1234, %v1259
  %v1285 = vmax.f32 %v1235, %v1260
  %v1286 = vsub.f32 %v1261, 0.5
  %v1287 = vsub.f32 %v1262, 0.5
  %v1288 = vsub.f32 %v1263, 0.5
  %v1289 = vsub.f32 %v1264, 0.5
  %v1290 = vsub.f32 %v1265, 0.5
  %v1291 = vsub.f32 %v1266, 0.5
  %v1292 = vsub.f32 %v1267, 0.5
  %v1293 = vsub.f32 %v1268, 0.5
  %v1294 = vsub.f32 %v1269, 0.5
  %v1295 = vsub.f32 %v1270, 0.5
  %v1296 = vsub.f32 %v1271, 0.5
  %v1297 = vsub.f32 %v1272, 0.5
  %v1298 = vsub.f32 %v1273, 0.5
  %v1299 = vsub.f32 %v1274, 0.5
  %v1300 = vsub.f32 %v1275, 0.5
  %v1301 = vsub.f32 %v1276, 0.5
  %v1302 = vsub.f32 %v1277, 0.5
  %v1303 = vsub.f32 %v1278, 0.5
  %v1304 = vsub.f32 %v1279, 0.5
  %v1305 = vsub.f32 %v1280, 0.5
  %v1306 = vsub.f32 %v1281, 0.5
  %v1307 = vsub.f32 %v1282, 0.5
  %v1308 = vsub.f32 %v1283, 0.5
  %v1309 = vsub.f32 %v1284, 0.5
  %v1310 = vsub.f32 %v1285, 0.5
  %v1311 = vmax.f32 %v1286, 0.0
  %v1312 = vmax.f32 %v1287, 0.0
  %v1313 = vmax.f32 %v1288, 0.0
  %v1314 = vmax.f32 %v1289, 0.0
  %v1315 = vmax.f32 %v1290, 0.0
  %v1316 = vmax.f32 %v1291, 0.0
  %v1317 = vmax.f32 %v1292, 0.0
  %v1318 = vmax.f32 %v1293, 0.0
  %v1319 = vmax.f32 %v1294, 0.0
  %v1320 = vmax.f32 %v1295, 0.0
  %v1321 = vmax.f32 %v1296, 0.0
  %v1322 = vmax.f32 %v1297, 0.0
  %v1323 = vmax.f32 %v1298, 0.0
  %v1324 = vmax.f32 %v1299, 0.0
  %v1325 = vmax.f32 %v1300, 0.0
  %v1326 = vmax.f32 %v1301, 0.0
  %v1327 = vmax.f32 %v1302, 0.0
  %v1328 = vmax.f32 %v1303, 0.0
  %v1329 = vmax.f32 %v1304, 0.0
  %v1330 = vmax.f32 %v1305, 0.0
  %v1331 = vmax.f32 %v1306, 0.0
  %v1332 = vmax.f32 %v1307, 0.0
  %v1333 = vmax.f32 %v1308, 0.0
  %v1334 = vmax.f32 %v1309, 0.0
  %v1335 = vmax.f32 %v1310, 0.0
  %v1336 = vld [vmem:[%s3] sm:$0xff]
  %v1337 = vld [vmem:[%s3 + $0x8] sm:$0xff]
  %v1338 = vld [vmem:[%s3 + $0x10] sm:$0xff]
  %v1339 = vld [vmem:[%s3 + $0x18] sm:$0xff]
  %v1340 = vld [vmem:[%s4] sm:$0x1]
  %v1342 = vlaneseq
  %v1343 = vshrl.u32 %v1342, 7
  %v1344 = vsub.s32 0, %v1343
  %v1345 = vrot.slane %v1340, %v1344
  %vm1347 = vcmask 261120
  %v1349 = vsel %vm1347, %v1311, 0
  %v1352 = vsel %vm1347, %v1312, 0
  %v1355 = vsel %vm1347, %v1313, 0
  %v1358 = vsel %vm1347, %v1314, 0
  %v1361 = vsel %vm1347, %v1315, 0
  %v1364 = vsel %vm1347, %v1316, 0
  %v1367 = vsel %vm1347, %v1317, 0
  %v1370 = vsel %vm1347, %v1318, 0
  %v1373 = vsel %vm1347, %v1319, 0
  %v1376 = vsel %vm1347, %v1320, 0
  %v1379 = vsel %vm1347, %v1321, 0
  %v1382 = vsel %vm1347, %v1322, 0
  %v1385 = vsel %vm1347, %v1323, 0
  %v1388 = vsel %vm1347, %v1324, 0
  %v1391 = vsel %vm1347, %v1325, 0
  %v1394 = vsel %vm1347, %v1326, 0
  %v1397 = vsel %vm1347, %v1327, 0
  %v1400 = vsel %vm1347, %v1328, 0
  %v1403 = vsel %vm1347, %v1329, 0
  %v1406 = vsel %vm1347, %v1330, 0
  %v1409 = vsel %vm1347, %v1331, 0
  %v1412 = vsel %vm1347, %v1332, 0
  %v1415 = vsel %vm1347, %v1333, 0
  %v1418 = vsel %vm1347, %v1334, 0
  %v1421 = vsel %vm1347, %v1335, 0
  %1423 = vmatprep.subr.mxu0 0.0
  %1424 = vmatpush1.msra.mxu0 %v1336
  %1425 = vmatprep.subr.mxu0 0.0
  %1426 = vmatpush1.msra.mxu0 %v1337
  %1427 = vmatprep.subr.mxu0 0.0
  %1428 = vmatpush1.msra.mxu0 %v1338
  %1429 = vmatprep.subr.mxu0 0.0
  %1430 = vmatpush1.msra.mxu0 %v1339
  %1431 = vmatprep.subr.mxu0 0.0
  %1432 = vmatpush1.msra.mxu0 0.0
  %1433 = vmatprep.subr.mxu0 0.0
  %1434 = vmatpush1.msra.mxu0 0.0
  %1435 = vmatprep.subr.mxu0 0.0
  %1436 = vmatpush1.msra.mxu0 0.0
  %1437 = vmatprep.subr.mxu0 0.0
  %1438 = vmatpush1.msra.mxu0 0.0
  %1439 = vmatprep.subr.mxu0 0.0
  %1440 = vmatpush1.msra.mxu0 0.0
  %1441 = vmatprep.subr.mxu0 0.0
  %1442 = vmatpush1.msra.mxu0 0.0
  %1443 = vmatprep.subr.mxu0 0.0
  %1444 = vmatpush1.msra.mxu0 0.0
  %1445 = vmatprep.subr.mxu0 0.0
  %1446 = vmatpush1.msra.mxu0 0.0
  %1447 = vmatprep.subr.mxu0 0.0
  %1448 = vmatpush1.msra.mxu0 0.0
  %1449 = vmatprep.subr.mxu0 0.0
  %1450 = vmatpush1.msra.mxu0 0.0
  %1451 = vmatprep.subr.mxu0 0.0
  %1452 = vmatpush1.msra.mxu0 0.0
  %1453 = vmatprep.subr.mxu0 0.0
  %1454 = vmatpush1.msra.mxu0 0.0
  %1455 = vmatprep.subr.mxu0 0.0
  %1456 = vmatpush1.msra.mxu0 0.0
  %1457 = vmatprep.subr.mxu0 0.0
  %1458 = vmatpush1.msra.mxu0 0.0
  %1459 = vmatprep.subr.mxu0 0.0
  %1460 = vmatpush1.msra.mxu0 0.0
  %1461 = vmatprep.subr.mxu0 0.0
  %1462 = vmatpush1.msra.mxu0 0.0
  %1463 = vmatprep.subr.mxu0 0.0
  %1464 = vmatpush1.msra.mxu0 0.0
  %1465 = vmatprep.subr.mxu0 0.0
  %1466 = vmatpush1.msra.mxu0 0.0
  %1467 = vmatprep.subr.mxu0 0.0
  %1468 = vmatpush1.msra.mxu0 0.0
  %1469 = vmatprep.subr.mxu0 0.0
  %1470 = vmatpush1.msra.mxu0 0.0
  %1471 = vmatprep.subr.mxu0 0.0
  %1472 = vmatpush1.msra.mxu0 0.0
  %1473 = vmatprep.subr.mxu0 0.0
  %1474 = vmatpush1.msra.mxu0 0.0
  %1475 = vmatprep.subr.mxu0 0.0
  %1476 = vmatpush1.msra.mxu0 0.0
  %1477 = vmatprep.subr.mxu0 0.0
  %1478 = vmatpush1.msra.mxu0 0.0
  %1479 = vmatprep.subr.mxu0 0.0
  %1480 = vmatpush1.msra.mxu0 0.0
  %1481 = vmatprep.subr.mxu0 0.0
  %1482 = vmatpush1.msra.mxu0 0.0
  %1483 = vmatprep.subr.mxu0 0.0
  %1484 = vmatpush1.msra.mxu0 0.0
  %1485 = vmatprep.subr.mxu0 0.0
  %1486 = vmatpush1.msra.mxu0 0.0
  %1487 = vmatprep.mubr.f32.mxu0 0.0
  %1488 = vmatmul.mubr.f32.gmra.mrb[0].mxu0 %v1349
  %v1489 = vpop.f32.mrb[0].mxu0
  %v1490 = vadd.f32 %v1345, %v1489
  %v1491 = vpop.f32.mrb[0].mxu0
  %1492 = vmatprep.mubr.f32.mxu0 0.0
  %1493 = vmatmul.mubr.f32.gmra.mrb[0].mxu0 %v1352
  %v1494 = vpop.f32.mrb[0].mxu0
  %v1495 = vadd.f32 %v1345, %v1494
  %v1496 = vpop.f32.mrb[0].mxu0
  %1497 = vmatprep.mubr.f32.mxu0 0.0
  %1498 = vmatmul.mubr.f32.gmra.mrb[0].mxu0 %v1355
  %v1499 = vpop.f32.mrb[0].mxu0
  %v1500 = vadd.f32 %v1345, %v1499
  %v1501 = vpop.f32.mrb[0].mxu0
  %1502 = vmatprep.mubr.f32.mxu0 0.0
  %1503 = vmatmul.mubr.f32.gmra.mrb[0].mxu0 %v1358
  %v1504 = vpop.f32.mrb[0].mxu0
  %v1505 = vadd.f32 %v1345, %v1504
  %v1506 = vpop.f32.mrb[0].mxu0
  %1507 = vmatprep.mubr.f32.mxu0 0.0
  %1508 = vmatmul.mubr.f32.gmra.mrb[0].mxu0 %v1361
  %v1509 = vpop.f32.mrb[0].mxu0
  %v1510 = vadd.f32 %v1345, %v1509
  %v1511 = vpop.f32.mrb[0].mxu0
  %1512 = vmatprep.mubr.f32.mxu0 0.0
  %1513 = vmatmul.mubr.f32.gmra.mrb[0].mxu0 %v1364
  %v1514 = vpop.f32.mrb[0].mxu0
  %v1515 = vadd.f32 %v1345, %v1514
  %v1516 = vpop.f32.mrb[0].mxu0
  %1517 = vmatprep.mubr.f32.mxu0 0.0
  %1518 = vmatmul.mubr.f32.gmra.mrb[0].mxu0 %v1367
  %v1519 = vpop.f32.mrb[0].mxu0
  %v1520 = vadd.f32 %v1345, %v1519
  %v1521 = vpop.f32.mrb[0].mxu0
  %1522 = vmatprep.mubr.f32.mxu0 0.0
  %1523 = vmatmul.mubr.f32.gmra.mrb[0].mxu0 %v1370
  %v1524 = vpop.f32.mrb[0].mxu0
  %v1525 = vadd.f32 %v1345, %v1524
  %v1526 = vpop.f32.mrb[0].mxu0
  %1527 = vmatprep.mubr.f32.mxu0 0.0
  %1528 = vmatmul.mubr.f32.gmra.mrb[0].mxu0 %v1373
  %v1529 = vpop.f32.mrb[0].mxu0
  %v1530 = vadd.f32 %v1345, %v1529
  %v1531 = vpop.f32.mrb[0].mxu0
  %1532 = vmatprep.mubr.f32.mxu0 0.0
  %1533 = vmatmul.mubr.f32.gmra.mrb[0].mxu0 %v1376
  %v1534 = vpop.f32.mrb[0].mxu0
  %v1535 = vadd.f32 %v1345, %v1534
  %v1536 = vpop.f32.mrb[0].mxu0
  %1537 = vmatprep.mubr.f32.mxu0 0.0
  %1538 = vmatmul.mubr.f32.gmra.mrb[0].mxu0 %v1379
  %v1539 = vpop.f32.mrb[0].mxu0
  %v1540 = vadd.f32 %v1345, %v1539
  %v1541 = vpop.f32.mrb[0].mxu0
  %1542 = vmatprep.mubr.f32.mxu0 0.0
  %1543 = vmatmul.mubr.f32.gmra.mrb[0].mxu0 %v1382
  %v1544 = vpop.f32.mrb[0].mxu0
  %v1545 = vadd.f32 %v1345, %v1544
  %v1546 = vpop.f32.mrb[0].mxu0
  %1547 = vmatprep.mubr.f32.mxu0 0.0
  %1548 = vmatmul.mubr.f32.gmra.mrb[0].mxu0 %v1385
  %v1549 = vpop.f32.mrb[0].mxu0
  %v1550 = vadd.f32 %v1345, %v1549
  %v1551 = vpop.f32.mrb[0].mxu0
  %1552 = vmatprep.mubr.f32.mxu0 0.0
  %1553 = vmatmul.mubr.f32.gmra.mrb[0].mxu0 %v1388
  %v1554 = vpop.f32.mrb[0].mxu0
  %v1555 = vadd.f32 %v1345, %v1554
  %v1556 = vpop.f32.mrb[0].mxu0
  %1557 = vmatprep.mubr.f32.mxu0 0.0
  %1558 = vmatmul.mubr.f32.gmra.mrb[0].mxu0 %v1391
  %v1559 = vpop.f32.mrb[0].mxu0
  %v1560 = vadd.f32 %v1345, %v1559
  %v1561 = vpop.f32.mrb[0].mxu0
  %1562 = vmatprep.mubr.f32.mxu0 0.0
  %1563 = vmatmul.mubr.f32.gmra.mrb[0].mxu0 %v1394
  %v1564 = vpop.f32.mrb[0].mxu0
  %v1565 = vadd.f32 %v1345, %v1564
  %v1566 = vpop.f32.mrb[0].mxu0
  %1567 = vmatprep.mubr.f32.mxu0 0.0
  %1568 = vmatmul.mubr.f32.gmra.mrb[0].mxu0 %v1397
  %v1569 = vpop.f32.mrb[0].mxu0
  %v1570 = vadd.f32 %v1345, %v1569
  %v1571 = vpop.f32.mrb[0].mxu0
  %1572 = vmatprep.mubr.f32.mxu0 0.0
  %1573 = vmatmul.mubr.f32.gmra.mrb[0].mxu0 %v1400
  %v1574 = vpop.f32.mrb[0].mxu0
  %v1575 = vadd.f32 %v1345, %v1574
  %v1576 = vpop.f32.mrb[0].mxu0
  %1577 = vmatprep.mubr.f32.mxu0 0.0
  %1578 = vmatmul.mubr.f32.gmra.mrb[0].mxu0 %v1403
  %v1579 = vpop.f32.mrb[0].mxu0
  %v1580 = vadd.f32 %v1345, %v1579
  %v1581 = vpop.f32.mrb[0].mxu0
  %1582 = vmatprep.mubr.f32.mxu0 0.0
  %1583 = vmatmul.mubr.f32.gmra.mrb[0].mxu0 %v1406
  %v1584 = vpop.f32.mrb[0].mxu0
  %v1585 = vadd.f32 %v1345, %v1584
  %v1586 = vpop.f32.mrb[0].mxu0
  %1587 = vmatprep.mubr.f32.mxu0 0.0
  %1588 = vmatmul.mubr.f32.gmra.mrb[0].mxu0 %v1409
  %v1589 = vpop.f32.mrb[0].mxu0
  %v1590 = vadd.f32 %v1345, %v1589
  %v1591 = vpop.f32.mrb[0].mxu0
  %1592 = vmatprep.mubr.f32.mxu0 0.0
  %1593 = vmatmul.mubr.f32.gmra.mrb[0].mxu0 %v1412
  %v1594 = vpop.f32.mrb[0].mxu0
  %v1595 = vadd.f32 %v1345, %v1594
  %v1596 = vpop.f32.mrb[0].mxu0
  %1597 = vmatprep.mubr.f32.mxu0 0.0
  %1598 = vmatmul.mubr.f32.gmra.mrb[0].mxu0 %v1415
  %v1599 = vpop.f32.mrb[0].mxu0
  %v1600 = vadd.f32 %v1345, %v1599
  %v1601 = vpop.f32.mrb[0].mxu0
  %1602 = vmatprep.mubr.f32.mxu0 0.0
  %1603 = vmatmul.mubr.f32.gmra.mrb[0].mxu0 %v1418
  %v1604 = vpop.f32.mrb[0].mxu0
  %v1605 = vadd.f32 %v1345, %v1604
  %v1606 = vpop.f32.mrb[0].mxu0
  %1607 = vmatprep.mubr.f32.mxu0 0.0
  %1608 = vmatmul.mubr.f32.gmra.mrb[0].mxu0 %v1421
  %v1609 = vpop.f32.mrb[0].mxu0
  %v1610 = vadd.f32 %v1345, %v1609
  %v1611 = vpop.f32.mrb[0].mxu0
  %1612 = vdwg.mxu0
  %v1613 = vtanh.pop %v1490
  %v1614 = vtanh.pop %v1495
  %v1615 = vtanh.pop %v1500
  %v1616 = vtanh.pop %v1505
  %v1617 = vtanh.pop %v1510
  %v1618 = vtanh.pop %v1515
  %v1619 = vtanh.pop %v1520
  %v1620 = vtanh.pop %v1525
  %v1621 = vtanh.pop %v1530
  %v1622 = vtanh.pop %v1535
  %v1623 = vtanh.pop %v1540
  %v1624 = vtanh.pop %v1545
  %v1625 = vtanh.pop %v1550
  %v1626 = vtanh.pop %v1555
  %v1627 = vtanh.pop %v1560
  %v1628 = vtanh.pop %v1565
  %v1629 = vtanh.pop %v1570
  %v1630 = vtanh.pop %v1575
  %v1631 = vtanh.pop %v1580
  %v1632 = vtanh.pop %v1585
  %v1633 = vtanh.pop %v1590
  %v1634 = vtanh.pop %v1595
  %v1635 = vtanh.pop %v1600
  %v1636 = vtanh.pop %v1605
  %v1637 = vtanh.pop %v1610
  %v1638 = vsub.f32 %v1613, 0.5
  %v1639 = vsub.f32 %v1614, 0.5
  %v1640 = vsub.f32 %v1615, 0.5
  %v1641 = vsub.f32 %v1616, 0.5
  %v1642 = vsub.f32 %v1617, 0.5
  %v1643 = vsub.f32 %v1618, 0.5
  %v1644 = vsub.f32 %v1619, 0.5
  %v1645 = vsub.f32 %v1620, 0.5
  %v1646 = vsub.f32 %v1621, 0.5
  %v1647 = vsub.f32 %v1622, 0.5
  %v1648 = vsub.f32 %v1623, 0.5
  %v1649 = vsub.f32 %v1624, 0.5
  %v1650 = vsub.f32 %v1625, 0.5
  %v1651 = vsub.f32 %v1626, 0.5
  %v1652 = vsub.f32 %v1627, 0.5
  %v1653 = vsub.f32 %v1628, 0.5
  %v1654 = vsub.f32 %v1629, 0.5
  %v1655 = vsub.f32 %v1630, 0.5
  %v1656 = vsub.f32 %v1631, 0.5
  %v1657 = vsub.f32 %v1632, 0.5
  %v1658 = vsub.f32 %v1633, 0.5
  %v1659 = vsub.f32 %v1634, 0.5
  %v1660 = vsub.f32 %v1635, 0.5
  %v1661 = vsub.f32 %v1636, 0.5
  %v1662 = vsub.f32 %v1637, 0.5
  %v1663 = vxor.u32 %v1638, 2147483648
  %v1664 = vxor.u32 %v1639, 2147483648
  %v1665 = vxor.u32 %v1640, 2147483648
  %v1666 = vxor.u32 %v1641, 2147483648
  %v1667 = vxor.u32 %v1642, 2147483648
  %v1668 = vxor.u32 %v1643, 2147483648
  %v1669 = vxor.u32 %v1644, 2147483648
  %v1670 = vxor.u32 %v1645, 2147483648
  %v1671 = vxor.u32 %v1646, 2147483648
  %v1672 = vxor.u32 %v1647, 2147483648
  %v1673 = vxor.u32 %v1648, 2147483648
  %v1674 = vxor.u32 %v1649, 2147483648
  %v1675 = vxor.u32 %v1650, 2147483648
  %v1676 = vxor.u32 %v1651, 2147483648
  %v1677 = vxor.u32 %v1652, 2147483648
  %v1678 = vxor.u32 %v1653, 2147483648
  %v1679 = vxor.u32 %v1654, 2147483648
  %v1680 = vxor.u32 %v1655, 2147483648
  %v1681 = vxor.u32 %v1656, 2147483648
  %v1682 = vxor.u32 %v1657, 2147483648
  %v1683 = vxor.u32 %v1658, 2147483648
  %v1684 = vxor.u32 %v1659, 2147483648
  %v1685 = vxor.u32 %v1660, 2147483648
  %v1686 = vxor.u32 %v1661, 2147483648
  %v1687 = vxor.u32 %v1662, 2147483648
  %v1688 = vmul.f32 %v1663, 1.442695
  %v1689 = vpow.pop %v1688
  %v1690 = vmul.f32 %v1664, 1.442695
  %v1691 = vpow.pop %v1690
  %v1692 = vmul.f32 %v1665, 1.442695
  %v1693 = vpow.pop %v1692
  %v1694 = vmul.f32 %v1666, 1.442695
  %v1695 = vpow.pop %v1694
  %v1696 = vmul.f32 %v1667, 1.442695
  %v1697 = vpow.pop %v1696
  %v1698 = vmul.f32 %v1668, 1.442695
  %v1699 = vpow.pop %v1698
  %v1700 = vmul.f32 %v1669, 1.442695
  %v1701 = vpow.pop %v1700
  %v1702 = vmul.f32 %v1670, 1.442695
  %v1703 = vpow.pop %v1702
  %v1704 = vmul.f32 %v1671, 1.442695
  %v1705 = vpow.pop %v1704
  %v1706 = vmul.f32 %v1672, 1.442695
  %v1707 = vpow.pop %v1706
  %v1708 = vmul.f32 %v1673, 1.442695
  %v1709 = vpow.pop %v1708
  %v1710 = vmul.f32 %v1674, 1.442695
  %v1711 = vpow.pop %v1710
  %v1712 = vmul.f32 %v1675, 1.442695
  %v1713 = vpow.pop %v1712
  %v1714 = vmul.f32 %v1676, 1.442695
  %v1715 = vpow.pop %v1714
  %v1716 = vmul.f32 %v1677, 1.442695
  %v1717 = vpow.pop %v1716
  %v1718 = vmul.f32 %v1678, 1.442695
  %v1719 = vpow.pop %v1718
  %v1720 = vmul.f32 %v1679, 1.442695
  %v1721 = vpow.pop %v1720
  %v1722 = vmul.f32 %v1680, 1.442695
  %v1723 = vpow.pop %v1722
  %v1724 = vmul.f32 %v1681, 1.442695
  %v1725 = vpow.pop %v1724
  %v1726 = vmul.f32 %v1682, 1.442695
  %v1727 = vpow.pop %v1726
  %v1728 = vmul.f32 %v1683, 1.442695
  %v1729 = vpow.pop %v1728
  %v1730 = vmul.f32 %v1684, 1.442695
  %v1731 = vpow.pop %v1730
  %v1732 = vmul.f32 %v1685, 1.442695
  %v1733 = vpow.pop %v1732
  %v1734 = vmul.f32 %v1686, 1.442695
  %v1735 = vpow.pop %v1734
  %v1736 = vmul.f32 %v1687, 1.442695
  %v1737 = vpow.pop %v1736
  %v1738 = vadd.f32 %v1689, 1.0
  %v1739 = vadd.f32 %v1691, 1.0
  %v1740 = vadd.f32 %v1693, 1.0
  %v1741 = vadd.f32 %v1695, 1.0
  %v1742 = vadd.f32 %v1697, 1.0
  %v1743 = vadd.f32 %v1699, 1.0
  %v1744 = vadd.f32 %v1701, 1.0
  %v1745 = vadd.f32 %v1703, 1.0
  %v1746 = vadd.f32 %v1705, 1.0
  %v1747 = vadd.f32 %v1707, 1.0
  %v1748 = vadd.f32 %v1709, 1.0
  %v1749 = vadd.f32 %v1711, 1.0
  %v1750 = vadd.f32 %v1713, 1.0
  %v1751 = vadd.f32 %v1715, 1.0
  %v1752 = vadd.f32 %v1717, 1.0
  %v1753 = vadd.f32 %v1719, 1.0
  %v1754 = vadd.f32 %v1721, 1.0
  %v1755 = vadd.f32 %v1723, 1.0
  %v1756 = vadd.f32 %v1725, 1.0
  %v1757 = vadd.f32 %v1727, 1.0
  %v1758 = vadd.f32 %v1729, 1.0
  %v1759 = vadd.f32 %v1731, 1.0
  %v1760 = vadd.f32 %v1733, 1.0
  %v1761 = vadd.f32 %v1735, 1.0
  %v1762 = vadd.f32 %v1737, 1.0
  %v1763 = vrcp.pop %v1738
  %v1764 = vmul.f32 1.0, %v1763
  %v1765 = vrcp.pop %v1739
  %v1766 = vmul.f32 1.0, %v1765
  %v1767 = vrcp.pop %v1740
  %v1768 = vmul.f32 1.0, %v1767
  %v1769 = vrcp.pop %v1741
  %v1770 = vmul.f32 1.0, %v1769
  %v1771 = vrcp.pop %v1742
  %v1772 = vmul.f32 1.0, %v1771
  %v1773 = vrcp.pop %v1743
  %v1774 = vmul.f32 1.0, %v1773
  %v1775 = vrcp.pop %v1744
  %v1776 = vmul.f32 1.0, %v1775
  %v1777 = vrcp.pop %v1745
  %v1778 = vmul.f32 1.0, %v1777
  %v1779 = vrcp.pop %v1746
  %v1780 = vmul.f32 1.0, %v1779
  %v1781 = vrcp.pop %v1747
  %v1782 = vmul.f32 1.0, %v1781
  %v1783 = vrcp.pop %v1748
  %v1784 = vmul.f32 1.0, %v1783
  %v1785 = vrcp.pop %v1749
  %v1786 = vmul.f32 1.0, %v1785
  %v1787 = vrcp.pop %v1750
  %v1788 = vmul.f32 1.0, %v1787
  %v1789 = vrcp.pop %v1751
  %v1790 = vmul.f32 1.0, %v1789
  %v1791 = vrcp.pop %v1752
  %v1792 = vmul.f32 1.0, %v1791
  %v1793 = vrcp.pop %v1753
  %v1794 = vmul.f32 1.0, %v1793
  %v1795 = vrcp.pop %v1754
  %v1796 = vmul.f32 1.0, %v1795
  %v1797 = vrcp.pop %v1755
  %v1798 = vmul.f32 1.0, %v1797
  %v1799 = vrcp.pop %v1756
  %v1800 = vmul.f32 1.0, %v1799
  %v1801 = vrcp.pop %v1757
  %v1802 = vmul.f32 1.0, %v1801
  %v1803 = vrcp.pop %v1758
  %v1804 = vmul.f32 1.0, %v1803
  %v1805 = vrcp.pop %v1759
  %v1806 = vmul.f32 1.0, %v1805
  %v1807 = vrcp.pop %v1760
  %v1808 = vmul.f32 1.0, %v1807
  %v1809 = vrcp.pop %v1761
  %v1810 = vmul.f32 1.0, %v1809
  %v1811 = vrcp.pop %v1762
  %v1812 = vmul.f32 1.0, %v1811
  %1813 = vst.msk [vmem:[%s5] sm:$0xff] %vm1347, %v1764
  %1814 = vst.msk [vmem:[%s5 + $0x8] sm:$0xff] %vm1347, %v1766
  %1815 = vst.msk [vmem:[%s5 + $0x10] sm:$0xff] %vm1347, %v1768
  %1816 = vst.msk [vmem:[%s5 + $0x18] sm:$0xff] %vm1347, %v1770
  %1817 = vst.msk [vmem:[%s5 + $0x20] sm:$0xff] %vm1347, %v1772
  %1818 = vst.msk [vmem:[%s5 + $0x28] sm:$0xff] %vm1347, %v1774
  %1819 = vst.msk [vmem:[%s5 + $0x30] sm:$0xff] %vm1347, %v1776
  %1820 = vst.msk [vmem:[%s5 + $0x38] sm:$0xff] %vm1347, %v1778
  %1821 = vst.msk [vmem:[%s5 + $0x40] sm:$0xff] %vm1347, %v1780
  %1822 = vst.msk [vmem:[%s5 + $0x48] sm:$0xff] %vm1347, %v1782
  %1823 = vst.msk [vmem:[%s5 + $0x50] sm:$0xff] %vm1347, %v1784
  %1824 = vst.msk [vmem:[%s5 + $0x58] sm:$0xff] %vm1347, %v1786
  %1825 = vst.msk [vmem:[%s5 + $0x60] sm:$0xff] %vm1347, %v1788
  %1826 = vst.msk [vmem:[%s5 + $0x68] sm:$0xff] %vm1347, %v1790
  %1827 = vst.msk [vmem:[%s5 + $0x70] sm:$0xff] %vm1347, %v1792
  %1828 = vst.msk [vmem:[%s5 + $0x78] sm:$0xff] %vm1347, %v1794
  %1829 = vst.msk [vmem:[%s5 + $0x80] sm:$0xff] %vm1347, %v1796
  %1830 = vst.msk [vmem:[%s5 + $0x88] sm:$0xff] %vm1347, %v1798
  %1831 = vst.msk [vmem:[%s5 + $0x90] sm:$0xff] %vm1347, %v1800
  %1832 = vst.msk [vmem:[%s5 + $0x98] sm:$0xff] %vm1347, %v1802
  %1833 = vst.msk [vmem:[%s5 + $0xa0] sm:$0xff] %vm1347, %v1804
  %1834 = vst.msk [vmem:[%s5 + $0xa8] sm:$0xff] %vm1347, %v1806
  %1835 = vst.msk [vmem:[%s5 + $0xb0] sm:$0xff] %vm1347, %v1808
  %1836 = vst.msk [vmem:[%s5 + $0xb8] sm:$0xff] %vm1347, %v1810
  %1837 = vst.msk [vmem:[%s5 + $0xc0] sm:$0xff] %vm1347, %v1812
  // Predicated region
  $region22: #{model_forward.1} parent=0 // pred_check
    _
  $region23: #{model_forward.1} parent=0 // pred_check_branch
    %1839 = sbr.rel (0) target = $region25
  $region24: #{model_forward.1} parent=0 // pred_region
    _
  $region25: #{model_forward.1} parent=0 // pred_fallthru
    _
  // Predicated region
  $region26: #{model_forward.1} parent=0 // pred_check
    _
  $region27: #{model_forward.1} parent=0 // pred_check_branch
    %1841 = sbr.rel (0) target = $region29
  $region28: #{model_forward.1} parent=0 // pred_region
    _
  $region29: #{model_forward.1} parent=0 // pred_fallthru
    _

</llo_original>
